<compile_context>
chip_gen: v5e
topology: v5e:2x2
jax: 0.10.0
libtpu: 0.0.40
codegen_flags: <defaults>
</compile_context>

<pallas_src>
import functools

import jax
import jax.numpy as jnp
from jax.experimental import pallas as pl
from jax.experimental.pallas import tpu as pltpu

EPS = 1e-5


# --------------------------- single fused encoder-layer kernel ---------------------------
def _encoder_layer_kernel(x_ref, bn_ref, wqkv_ref, bqkv_ref, wo_ref, bo_ref,
                          w1_ref, b1_ref, w2_ref, b2_ref, o_ref, *, num_attn):
    B, L, D = x_ref.shape
    N = B * L

    # Residual stream stays in f32 in VMEM/vregs for the whole layer.
    x = x_ref[...].reshape(N, D).astype(jnp.float32)

    def batchnorm(xr, idx):
        # BatchNorm1d over all B*L rows, training statistics, biased variance.
        bn = bn_ref[idx]                                        # (2, D): gamma, beta
        mean = jnp.mean(xr, axis=0, keepdims=True)
        xc = xr - mean
        var = jnp.mean(xc * xc, axis=0, keepdims=True)          # shifted two-pass
        return xc * jax.lax.rsqrt(var + EPS) * bn[0:1, :] + bn[1:2, :]

    def mm(a_f32, w_f32, bias):
        # bf16 MXU operands, f32 accumulation, f32 bias add.
        return jnp.dot(a_f32.astype(jnp.bfloat16), w_f32.astype(jnp.bfloat16),
                       preferred_element_type=jnp.float32) + bias

    # ---- (num_sublayers - 1) self-attention sublayers (shared weights) ----
    for i in range(num_attn):
        xn = batchnorm(x, i)                                    # (N, D)

        # One wide QKV projection: (N, D) @ (D, 3D).  1/sqrt(D) already folded
        # into the Wq / bq columns at pack time.
        qkv = mm(xn, wqkv_ref[...], bqkv_ref[...])              # (N, 3D) f32
        qkv = qkv.reshape(B, L, 3 * D)
        q = qkv[:, :, 0:D]
        k = qkv[:, :, D:2 * D]
        v = qkv[:, :, 2 * D:3 * D]

        # q @ k^T via batched contraction on the last axes (no explicit k transpose).
        s = jnp.einsum("bqd,bkd->bqk",
                       q.astype(jnp.bfloat16), k.astype(jnp.bfloat16),
                       preferred_element_type=jnp.float32)      # (B, L, L) f32
        s = s - jnp.max(s, axis=-1, keepdims=True)
        p = jnp.exp(s)
        p = p / jnp.sum(p, axis=-1, keepdims=True)              # exact normalization

        ctx = jnp.einsum("bqk,bkd->bqd",
                         p.astype(jnp.bfloat16), v.astype(jnp.bfloat16),
                         preferred_element_type=jnp.float32)    # (B, L, D) f32
        proj = mm(ctx.reshape(N, D), wo_ref[...], bo_ref[...])  # (N, D)

        x = x + proj                                            # residual (f32)

    # ---- final feed-forward sublayer ----
    xn = batchnorm(x, num_attn)
    h = jnp.maximum(mm(xn, w1_ref[...], b1_ref[...]), 0.0)      # (N, d_ff)
    x = x + mm(h, w2_ref[...], b2_ref[...])                     # residual (f32)

    o_ref[...] = x.reshape(B, L, D).astype(o_ref.dtype)


def encoder_layer(x, kp):
    """Full EncoderLayer forward as a single pallas_call (x stays in VMEM)."""
    B, L, D = x.shape
    S = kp["bn"].shape[0]                                       # num_sublayers
    d_ff = kp["w1"].shape[1]

    def full(shape):
        return pl.BlockSpec(shape, lambda i, _n=len(shape): (0,) * _n)

    return pl.pallas_call(
        functools.partial(_encoder_layer_kernel, num_attn=S - 1),
        out_shape=jax.ShapeDtypeStruct((B, L, D), x.dtype),
        grid=(1,),
        in_specs=[full((B, L, D)),              # x
                  full((S, 2, D)),              # per-sublayer (gamma, beta)
                  full((D, 3 * D)),             # packed Wq|Wk|Wv (scale folded into Wq)
                  full((1, 3 * D)),             # packed bq|bk|bv
                  full((D, D)), full((1, D)),   # Wo, bo
                  full((D, d_ff)), full((1, d_ff)),   # W1, b1
                  full((d_ff, D)), full((1, D))],     # W2, b2
        out_specs=full((B, L, D)),
        compiler_params=pltpu.CompilerParams(dimension_semantics=("arbitrary",)),
    )(x, kp["bn"], kp["w_qkv"], kp["b_qkv"], kp["w_o"], kp["b_o"],
      kp["w1"], kp["b1"], kp["w2"], kp["b2"])


# ------------------------------------ parameters ------------------------------------
def init_params(key, D, d_ff, num_sublayers):
    """Canonical (PyTorch-layout) parameters; used by the pure-JAX reference."""
    ks = jax.random.split(key, 12)
    s = 0.05
    p = {
        "wq": jax.random.normal(ks[0], (D, D), jnp.float32) * s,
        "wk": jax.random.normal(ks[1], (D, D), jnp.float32) * s,
        "wv": jax.random.normal(ks[2], (D, D), jnp.float32) * s,
        "wo": jax.random.normal(ks[3], (D, D), jnp.float32) * s,
        "bq": jax.random.normal(ks[4], (D,), jnp.float32) * s,
        "bk": jax.random.normal(ks[5], (D,), jnp.float32) * s,
        "bv": jax.random.normal(ks[6], (D,), jnp.float32) * s,
        "bo": jax.random.normal(ks[7], (D,), jnp.float32) * s,
        "w1": jax.random.normal(ks[8], (D, d_ff), jnp.float32) * s,
        "b1": jax.random.normal(ks[9], (d_ff,), jnp.float32) * s,
        "w2": jax.random.normal(ks[10], (d_ff, D), jnp.float32) * s,
        "b2": jax.random.normal(ks[11], (D,), jnp.float32) * s,
        # nn.BatchNorm1d default affine init: weight = 1, bias = 0 (one per sublayer)
        "bn_gamma": jnp.ones((num_sublayers, D), jnp.float32),
        "bn_beta": jnp.zeros((num_sublayers, D), jnp.float32),
    }
    return p


def pack_params(p):
    """One-time (init-time) packing for the kernel: wide QKV RHS, folded scale."""
    D = p["wq"].shape[0]
    scale = 1.0 / jnp.sqrt(jnp.float32(D))
    w_qkv = jnp.concatenate([p["wq"] * scale, p["wk"], p["wv"]], axis=1)     # (D, 3D)
    b_qkv = jnp.concatenate([p["bq"] * scale, p["bk"], p["bv"]], axis=0)     # (3D,)
    return {
        "w_qkv": w_qkv,
        "b_qkv": b_qkv.reshape(1, -1),
        "w_o": p["wo"], "b_o": p["bo"].reshape(1, D),
        "w1": p["w1"], "b1": p["b1"].reshape(1, -1),
        "w2": p["w2"], "b2": p["b2"].reshape(1, D),
        "bn": jnp.stack([p["bn_gamma"], p["bn_beta"]], axis=1),              # (S, 2, D)
    }


# ----------------------------- pure-JAX reference check -----------------------------
def reference(x, p):
    B, L, D = x.shape
    S = p["bn_gamma"].shape[0]

    def bn(x2d, i):
        mean = jnp.mean(x2d, axis=0, keepdims=True)
        var = jnp.mean((x2d - mean) ** 2, axis=0, keepdims=True)
        return (x2d - mean) * jax.lax.rsqrt(var + EPS) * p["bn_gamma"][i] + p["bn_beta"][i]

    def attn(xn):
        q = xn @ p["wq"] + p["bq"]
        k = xn @ p["wk"] + p["bk"]
        v = xn @ p["wv"] + p["bv"]
        s = jnp.einsum("bqd,bkd->bqk", q, k) / jnp.sqrt(jnp.float32(D))
        a = jax.nn.softmax(s, axis=-1)
        return jnp.einsum("bqk,bkd->bqd", a, v) @ p["wo"] + p["bo"]

    def ffn(xn):
        h = jnp.maximum(xn @ p["w1"] + p["b1"], 0.0)
        return h @ p["w2"] + p["b2"]

    for i in range(S - 1):
        xn = bn(x.reshape(-1, D), i).reshape(B, L, D)
        x = x + attn(xn)
    xn = bn(x.reshape(-1, D), S - 1).reshape(B, L, D)
    return x + ffn(xn)


if __name__ == "__main__":
    # Lane-dense feature dims (multiples of 128); B*L a multiple of 8.
    B, L, D, d_ff, num_sublayers = 2, 8, 128, 256, 3
    key = jax.random.PRNGKey(0)
    kx, kp = jax.random.split(key)
    x = jax.random.normal(kx, (B, L, D), jnp.float32)
    params = init_params(kp, D, d_ff, num_sublayers)
    kernel_params = pack_params(params)      # done once, outside the jitted call

    out = jax.jit(encoder_layer)(x, kernel_params)
    jax.block_until_ready(out)
    assert out.shape == (B, L, D) and out.dtype == jnp.float32

    ref = reference(x, params)
    err = float(jnp.max(jnp.abs(out - ref)))
    # bf16 MXU operands (f32 accumulation) introduce ~1e-2-level error vs the f32 reference.
    assert err < 5e-2, f"mismatch vs reference: max abs err {err}"
    print("KERNEL_OK")
</pallas_src>

<mosaic_0001>
module attributes {stable_mosaic.version = 11 : i64} {
  func.func @_encoder_layer_kernel(%arg0: i32, %arg1: memref<2x8x128xf32, #tpu.memory_space<vmem>>, %arg2: memref<3x2x128xf32, #tpu.memory_space<vmem>>, %arg3: memref<128x384xf32, #tpu.memory_space<vmem>>, %arg4: memref<1x384xf32, #tpu.memory_space<vmem>>, %arg5: memref<128x128xf32, #tpu.memory_space<vmem>>, %arg6: memref<1x128xf32, #tpu.memory_space<vmem>>, %arg7: memref<128x256xf32, #tpu.memory_space<vmem>>, %arg8: memref<1x256xf32, #tpu.memory_space<vmem>>, %arg9: memref<256x128xf32, #tpu.memory_space<vmem>>, %arg10: memref<1x128xf32, #tpu.memory_space<vmem>>, %arg11: memref<2x8x128xf32, #tpu.memory_space<vmem>>) attributes {dimension_semantics = [#tpu.dimension_semantics<arbitrary>], iteration_bounds = array<i64: 1>, scalar_prefetch = 0 : i64, scratch_operands = 0 : i64, tpu.core_type = #tpu.core_type<tc>, window_params = [{pipeline_mode = #tpu.pipeline_mode<synchronous>, transform_indices = @transform_0, window_bounds = array<i64: 2, 8, 128>}, {pipeline_mode = #tpu.pipeline_mode<synchronous>, transform_indices = @transform_1, window_bounds = array<i64: 3, 2, 128>}, {pipeline_mode = #tpu.pipeline_mode<synchronous>, transform_indices = @transform_2, window_bounds = array<i64: 128, 384>}, {pipeline_mode = #tpu.pipeline_mode<synchronous>, transform_indices = @transform_3, window_bounds = array<i64: 1, 384>}, {pipeline_mode = #tpu.pipeline_mode<synchronous>, transform_indices = @transform_4, window_bounds = array<i64: 128, 128>}, {pipeline_mode = #tpu.pipeline_mode<synchronous>, transform_indices = @transform_5, window_bounds = array<i64: 1, 128>}, {pipeline_mode = #tpu.pipeline_mode<synchronous>, transform_indices = @transform_6, window_bounds = array<i64: 128, 256>}, {pipeline_mode = #tpu.pipeline_mode<synchronous>, transform_indices = @transform_7, window_bounds = array<i64: 1, 256>}, {pipeline_mode = #tpu.pipeline_mode<synchronous>, transform_indices = @transform_8, window_bounds = array<i64: 256, 128>}, {pipeline_mode = #tpu.pipeline_mode<synchronous>, transform_indices = @transform_9, window_bounds = array<i64: 1, 128>}, {pipeline_mode = #tpu.pipeline_mode<synchronous>, transform_indices = @transform_10, window_bounds = array<i64: 2, 8, 128>}]} {
    %c0 = arith.constant 0 : index
    %c0_0 = arith.constant 0 : index
    %c0_1 = arith.constant 0 : index
    %0 = vector.load %arg1[%c0, %c0_0, %c0_1] : memref<2x8x128xf32, #tpu.memory_space<vmem>>, vector<2x8x128xf32>
    %1 = vector.shape_cast %0 : vector<2x8x128xf32> to vector<16x128xf32>
    %c0_2 = arith.constant 0 : index
    %c0_3 = arith.constant 0 : index
    %c0_4 = arith.constant 0 : index
    %2 = vector.load %arg2[%c0_2, %c0_3, %c0_4] : memref<3x2x128xf32, #tpu.memory_space<vmem>>, vector<1x2x128xf32>
    %3 = vector.shape_cast %2 : vector<1x2x128xf32> to vector<2x128xf32>
    %cst = arith.constant dense<0.000000e+00> : vector<128xf32>
    %4 = vector.multi_reduction <add>, %1, %cst [0] : vector<16x128xf32> to vector<128xf32>
    %5 = vector.shape_cast %4 : vector<128xf32> to vector<1x128xf32>
    %cst_5 = arith.constant 1.600000e+01 : f32
    %6 = vector.broadcast %cst_5 : f32 to vector<1x128xf32>
    %7 = arith.divf %5, %6 : vector<1x128xf32>
    %8 = vector.broadcast %7 : vector<1x128xf32> to vector<16x128xf32>
    %9 = arith.subf %1, %8 : vector<16x128xf32>
    %10 = arith.mulf %9, %9 : vector<16x128xf32>
    %cst_6 = arith.constant dense<0.000000e+00> : vector<128xf32>
    %11 = vector.multi_reduction <add>, %10, %cst_6 [0] : vector<16x128xf32> to vector<128xf32>
    %12 = vector.shape_cast %11 : vector<128xf32> to vector<1x128xf32>
    %cst_7 = arith.constant 1.600000e+01 : f32
    %13 = vector.broadcast %cst_7 : f32 to vector<1x128xf32>
    %14 = arith.divf %12, %13 : vector<1x128xf32>
    %cst_8 = arith.constant 9.99999974E-6 : f32
    %15 = vector.broadcast %cst_8 : f32 to vector<1x128xf32>
    %16 = arith.addf %14, %15 : vector<1x128xf32>
    %17 = math.rsqrt %16 : vector<1x128xf32>
    %18 = vector.broadcast %17 : vector<1x128xf32> to vector<16x128xf32>
    %19 = arith.mulf %9, %18 : vector<16x128xf32>
    %20 = vector.extract_strided_slice %3 {offsets = [0, 0], sizes = [1, 128], strides = [1, 1]} : vector<2x128xf32> to vector<1x128xf32>
    %21 = vector.broadcast %20 : vector<1x128xf32> to vector<16x128xf32>
    %22 = arith.mulf %19, %21 : vector<16x128xf32>
    %23 = vector.extract_strided_slice %3 {offsets = [1, 0], sizes = [1, 128], strides = [1, 1]} : vector<2x128xf32> to vector<1x128xf32>
    %24 = vector.broadcast %23 : vector<1x128xf32> to vector<16x128xf32>
    %25 = arith.addf %22, %24 : vector<16x128xf32>
    %c0_9 = arith.constant 0 : index
    %c0_10 = arith.constant 0 : index
    %26 = vector.load %arg3[%c0_9, %c0_10] : memref<128x384xf32, #tpu.memory_space<vmem>>, vector<128x384xf32>
    %c0_11 = arith.constant 0 : index
    %c0_12 = arith.constant 0 : index
    %27 = vector.load %arg4[%c0_11, %c0_12] : memref<1x384xf32, #tpu.memory_space<vmem>>, vector<1x384xf32>
    %28 = arith.truncf %25 : vector<16x128xf32> to vector<16x128xbf16>
    %29 = arith.truncf %26 : vector<128x384xf32> to vector<128x384xbf16>
    %cst_13 = arith.constant dense<0.000000e+00> : vector<16x384xf32>
    %30 = tpu.matmul %28, %29, %cst_13 {dimension_numbers = #tpu.dot_dimension_numbers<[1], [0], [0], [1], [0, 0, 1, 1], [], []>} : vector<16x128xbf16>, vector<128x384xbf16>, vector<16x384xf32> -> vector<16x384xf32>
    %31 = vector.broadcast %27 : vector<1x384xf32> to vector<16x384xf32>
    %32 = arith.addf %30, %31 : vector<16x384xf32>
    %33 = vector.shape_cast %32 : vector<16x384xf32> to vector<2x8x384xf32>
    %34 = vector.extract_strided_slice %33 {offsets = [0, 0, 0], sizes = [2, 8, 128], strides = [1, 1, 1]} : vector<2x8x384xf32> to vector<2x8x128xf32>
    %35 = vector.extract_strided_slice %33 {offsets = [0, 0, 128], sizes = [2, 8, 128], strides = [1, 1, 1]} : vector<2x8x384xf32> to vector<2x8x128xf32>
    %36 = vector.extract_strided_slice %33 {offsets = [0, 0, 256], sizes = [2, 8, 128], strides = [1, 1, 1]} : vector<2x8x384xf32> to vector<2x8x128xf32>
    %37 = arith.truncf %34 : vector<2x8x128xf32> to vector<2x8x128xbf16>
    %38 = arith.truncf %35 : vector<2x8x128xf32> to vector<2x8x128xbf16>
    "tpu.trace_start"() <{level = 10 : i32, message = "bqd,bkd->bqk"}> : () -> ()
    %cst_14 = arith.constant dense<0.000000e+00> : vector<2x8x8xf32>
    %39 = tpu.matmul %37, %38, %cst_14 {dimension_numbers = #tpu.dot_dimension_numbers<[2], [2], [1], [1], [0, 0, 0, 1, 1, 1], [0], [0]>} : vector<2x8x128xbf16>, vector<2x8x128xbf16>, vector<2x8x8xf32> -> vector<2x8x8xf32>
    "tpu.trace_stop"() : () -> ()
    %cst_15 = arith.constant dense<0xFF800000> : vector<2x8xf32>
    %40 = vector.multi_reduction <maximumf>, %39, %cst_15 [2] : vector<2x8x8xf32> to vector<2x8xf32>
    %41 = vector.shape_cast %40 : vector<2x8xf32> to vector<2x8x1xf32>
    %42 = vector.broadcast %41 : vector<2x8x1xf32> to vector<2x8x8xf32>
    %43 = arith.subf %39, %42 : vector<2x8x8xf32>
    %44 = math.exp %43 : vector<2x8x8xf32>
    %cst_16 = arith.constant dense<0.000000e+00> : vector<2x8xf32>
    %45 = vector.multi_reduction <add>, %44, %cst_16 [2] : vector<2x8x8xf32> to vector<2x8xf32>
    %46 = vector.shape_cast %45 : vector<2x8xf32> to vector<2x8x1xf32>
    %47 = vector.broadcast %46 : vector<2x8x1xf32> to vector<2x8x8xf32>
    %48 = arith.divf %44, %47 : vector<2x8x8xf32>
    %49 = arith.truncf %48 : vector<2x8x8xf32> to vector<2x8x8xbf16>
    %50 = arith.truncf %36 : vector<2x8x128xf32> to vector<2x8x128xbf16>
    "tpu.trace_start"() <{level = 10 : i32, message = "bqk,bkd->bqd"}> : () -> ()
    %cst_17 = arith.constant dense<0.000000e+00> : vector<2x8x128xf32>
    %51 = tpu.matmul %49, %50, %cst_17 {dimension_numbers = #tpu.dot_dimension_numbers<[2], [1], [1], [2], [0, 0, 0, 1, 1, 2], [0], [0]>} : vector<2x8x8xbf16>, vector<2x8x128xbf16>, vector<2x8x128xf32> -> vector<2x8x128xf32>
    "tpu.trace_stop"() : () -> ()
    %52 = vector.shape_cast %51 : vector<2x8x128xf32> to vector<16x128xf32>
    %c0_18 = arith.constant 0 : index
    %c0_19 = arith.constant 0 : index
    %53 = vector.load %arg5[%c0_18, %c0_19] : memref<128x128xf32, #tpu.memory_space<vmem>>, vector<128x128xf32>
    %c0_20 = arith.constant 0 : index
    %c0_21 = arith.constant 0 : index
    %54 = vector.load %arg6[%c0_20, %c0_21] : memref<1x128xf32, #tpu.memory_space<vmem>>, vector<1x128xf32>
    %55 = arith.truncf %52 : vector<16x128xf32> to vector<16x128xbf16>
    %56 = arith.truncf %53 : vector<128x128xf32> to vector<128x128xbf16>
    %cst_22 = arith.constant dense<0.000000e+00> : vector<16x128xf32>
    %57 = tpu.matmul %55, %56, %cst_22 {dimension_numbers = #tpu.dot_dimension_numbers<[1], [0], [0], [1], [0, 0, 1, 1], [], []>} : vector<16x128xbf16>, vector<128x128xbf16>, vector<16x128xf32> -> vector<16x128xf32>
    %58 = vector.broadcast %54 : vector<1x128xf32> to vector<16x128xf32>
    %59 = arith.addf %57, %58 : vector<16x128xf32>
    %60 = arith.addf %1, %59 : vector<16x128xf32>
    %c1 = arith.constant 1 : index
    %c0_23 = arith.constant 0 : index
    %c0_24 = arith.constant 0 : index
    %61 = vector.load %arg2[%c1, %c0_23, %c0_24] : memref<3x2x128xf32, #tpu.memory_space<vmem>>, vector<1x2x128xf32>
    %62 = vector.shape_cast %61 : vector<1x2x128xf32> to vector<2x128xf32>
    %cst_25 = arith.constant dense<0.000000e+00> : vector<128xf32>
    %63 = vector.multi_reduction <add>, %60, %cst_25 [0] : vector<16x128xf32> to vector<128xf32>
    %64 = vector.shape_cast %63 : vector<128xf32> to vector<1x128xf32>
    %cst_26 = arith.constant 1.600000e+01 : f32
    %65 = vector.broadcast %cst_26 : f32 to vector<1x128xf32>
    %66 = arith.divf %64, %65 : vector<1x128xf32>
    %67 = vector.broadcast %66 : vector<1x128xf32> to vector<16x128xf32>
    %68 = arith.subf %60, %67 : vector<16x128xf32>
    %69 = arith.mulf %68, %68 : vector<16x128xf32>
    %cst_27 = arith.constant dense<0.000000e+00> : vector<128xf32>
    %70 = vector.multi_reduction <add>, %69, %cst_27 [0] : vector<16x128xf32> to vector<128xf32>
    %71 = vector.shape_cast %70 : vector<128xf32> to vector<1x128xf32>
    %cst_28 = arith.constant 1.600000e+01 : f32
    %72 = vector.broadcast %cst_28 : f32 to vector<1x128xf32>
    %73 = arith.divf %71, %72 : vector<1x128xf32>
    %cst_29 = arith.constant 9.99999974E-6 : f32
    %74 = vector.broadcast %cst_29 : f32 to vector<1x128xf32>
    %75 = arith.addf %73, %74 : vector<1x128xf32>
    %76 = math.rsqrt %75 : vector<1x128xf32>
    %77 = vector.broadcast %76 : vector<1x128xf32> to vector<16x128xf32>
    %78 = arith.mulf %68, %77 : vector<16x128xf32>
    %79 = vector.extract_strided_slice %62 {offsets = [0, 0], sizes = [1, 128], strides = [1, 1]} : vector<2x128xf32> to vector<1x128xf32>
    %80 = vector.broadcast %79 : vector<1x128xf32> to vector<16x128xf32>
    %81 = arith.mulf %78, %80 : vector<16x128xf32>
    %82 = vector.extract_strided_slice %62 {offsets = [1, 0], sizes = [1, 128], strides = [1, 1]} : vector<2x128xf32> to vector<1x128xf32>
    %83 = vector.broadcast %82 : vector<1x128xf32> to vector<16x128xf32>
    %84 = arith.addf %81, %83 : vector<16x128xf32>
    %c0_30 = arith.constant 0 : index
    %c0_31 = arith.constant 0 : index
    %85 = vector.load %arg3[%c0_30, %c0_31] : memref<128x384xf32, #tpu.memory_space<vmem>>, vector<128x384xf32>
    %c0_32 = arith.constant 0 : index
    %c0_33 = arith.constant 0 : index
    %86 = vector.load %arg4[%c0_32, %c0_33] : memref<1x384xf32, #tpu.memory_space<vmem>>, vector<1x384xf32>
    %87 = arith.truncf %84 : vector<16x128xf32> to vector<16x128xbf16>
    %88 = arith.truncf %85 : vector<128x384xf32> to vector<128x384xbf16>
    %cst_34 = arith.constant dense<0.000000e+00> : vector<16x384xf32>
    %89 = tpu.matmul %87, %88, %cst_34 {dimension_numbers = #tpu.dot_dimension_numbers<[1], [0], [0], [1], [0, 0, 1, 1], [], []>} : vector<16x128xbf16>, vector<128x384xbf16>, vector<16x384xf32> -> vector<16x384xf32>
    %90 = vector.broadcast %86 : vector<1x384xf32> to vector<16x384xf32>
    %91 = arith.addf %89, %90 : vector<16x384xf32>
    %92 = vector.shape_cast %91 : vector<16x384xf32> to vector<2x8x384xf32>
    %93 = vector.extract_strided_slice %92 {offsets = [0, 0, 0], sizes = [2, 8, 128], strides = [1, 1, 1]} : vector<2x8x384xf32> to vector<2x8x128xf32>
    %94 = vector.extract_strided_slice %92 {offsets = [0, 0, 128], sizes = [2, 8, 128], strides = [1, 1, 1]} : vector<2x8x384xf32> to vector<2x8x128xf32>
    %95 = vector.extract_strided_slice %92 {offsets = [0, 0, 256], sizes = [2, 8, 128], strides = [1, 1, 1]} : vector<2x8x384xf32> to vector<2x8x128xf32>
    %96 = arith.truncf %93 : vector<2x8x128xf32> to vector<2x8x128xbf16>
    %97 = arith.truncf %94 : vector<2x8x128xf32> to vector<2x8x128xbf16>
    "tpu.trace_start"() <{level = 10 : i32, message = "bqd,bkd->bqk"}> : () -> ()
    %cst_35 = arith.constant dense<0.000000e+00> : vector<2x8x8xf32>
    %98 = tpu.matmul %96, %97, %cst_35 {dimension_numbers = #tpu.dot_dimension_numbers<[2], [2], [1], [1], [0, 0, 0, 1, 1, 1], [0], [0]>} : vector<2x8x128xbf16>, vector<2x8x128xbf16>, vector<2x8x8xf32> -> vector<2x8x8xf32>
    "tpu.trace_stop"() : () -> ()
    %cst_36 = arith.constant dense<0xFF800000> : vector<2x8xf32>
    %99 = vector.multi_reduction <maximumf>, %98, %cst_36 [2] : vector<2x8x8xf32> to vector<2x8xf32>
    %100 = vector.shape_cast %99 : vector<2x8xf32> to vector<2x8x1xf32>
    %101 = vector.broadcast %100 : vector<2x8x1xf32> to vector<2x8x8xf32>
    %102 = arith.subf %98, %101 : vector<2x8x8xf32>
    %103 = math.exp %102 : vector<2x8x8xf32>
    %cst_37 = arith.constant dense<0.000000e+00> : vector<2x8xf32>
    %104 = vector.multi_reduction <add>, %103, %cst_37 [2] : vector<2x8x8xf32> to vector<2x8xf32>
    %105 = vector.shape_cast %104 : vector<2x8xf32> to vector<2x8x1xf32>
    %106 = vector.broadcast %105 : vector<2x8x1xf32> to vector<2x8x8xf32>
    %107 = arith.divf %103, %106 : vector<2x8x8xf32>
    %108 = arith.truncf %107 : vector<2x8x8xf32> to vector<2x8x8xbf16>
    %109 = arith.truncf %95 : vector<2x8x128xf32> to vector<2x8x128xbf16>
    "tpu.trace_start"() <{level = 10 : i32, message = "bqk,bkd->bqd"}> : () -> ()
    %cst_38 = arith.constant dense<0.000000e+00> : vector<2x8x128xf32>
    %110 = tpu.matmul %108, %109, %cst_38 {dimension_numbers = #tpu.dot_dimension_numbers<[2], [1], [1], [2], [0, 0, 0, 1, 1, 2], [0], [0]>} : vector<2x8x8xbf16>, vector<2x8x128xbf16>, vector<2x8x128xf32> -> vector<2x8x128xf32>
    "tpu.trace_stop"() : () -> ()
    %111 = vector.shape_cast %110 : vector<2x8x128xf32> to vector<16x128xf32>
    %c0_39 = arith.constant 0 : index
    %c0_40 = arith.constant 0 : index
    %112 = vector.load %arg5[%c0_39, %c0_40] : memref<128x128xf32, #tpu.memory_space<vmem>>, vector<128x128xf32>
    %c0_41 = arith.constant 0 : index
    %c0_42 = arith.constant 0 : index
    %113 = vector.load %arg6[%c0_41, %c0_42] : memref<1x128xf32, #tpu.memory_space<vmem>>, vector<1x128xf32>
    %114 = arith.truncf %111 : vector<16x128xf32> to vector<16x128xbf16>
    %115 = arith.truncf %112 : vector<128x128xf32> to vector<128x128xbf16>
    %cst_43 = arith.constant dense<0.000000e+00> : vector<16x128xf32>
    %116 = tpu.matmul %114, %115, %cst_43 {dimension_numbers = #tpu.dot_dimension_numbers<[1], [0], [0], [1], [0, 0, 1, 1], [], []>} : vector<16x128xbf16>, vector<128x128xbf16>, vector<16x128xf32> -> vector<16x128xf32>
    %117 = vector.broadcast %113 : vector<1x128xf32> to vector<16x128xf32>
    %118 = arith.addf %116, %117 : vector<16x128xf32>
    %119 = arith.addf %60, %118 : vector<16x128xf32>
    %c2 = arith.constant 2 : index
    %c0_44 = arith.constant 0 : index
    %c0_45 = arith.constant 0 : index
    %120 = vector.load %arg2[%c2, %c0_44, %c0_45] : memref<3x2x128xf32, #tpu.memory_space<vmem>>, vector<1x2x128xf32>
    %121 = vector.shape_cast %120 : vector<1x2x128xf32> to vector<2x128xf32>
    %cst_46 = arith.constant dense<0.000000e+00> : vector<128xf32>
    %122 = vector.multi_reduction <add>, %119, %cst_46 [0] : vector<16x128xf32> to vector<128xf32>
    %123 = vector.shape_cast %122 : vector<128xf32> to vector<1x128xf32>
    %cst_47 = arith.constant 1.600000e+01 : f32
    %124 = vector.broadcast %cst_47 : f32 to vector<1x128xf32>
    %125 = arith.divf %123, %124 : vector<1x128xf32>
    %126 = vector.broadcast %125 : vector<1x128xf32> to vector<16x128xf32>
    %127 = arith.subf %119, %126 : vector<16x128xf32>
    %128 = arith.mulf %127, %127 : vector<16x128xf32>
    %cst_48 = arith.constant dense<0.000000e+00> : vector<128xf32>
    %129 = vector.multi_reduction <add>, %128, %cst_48 [0] : vector<16x128xf32> to vector<128xf32>
    %130 = vector.shape_cast %129 : vector<128xf32> to vector<1x128xf32>
    %cst_49 = arith.constant 1.600000e+01 : f32
    %131 = vector.broadcast %cst_49 : f32 to vector<1x128xf32>
    %132 = arith.divf %130, %131 : vector<1x128xf32>
    %cst_50 = arith.constant 9.99999974E-6 : f32
    %133 = vector.broadcast %cst_50 : f32 to vector<1x128xf32>
    %134 = arith.addf %132, %133 : vector<1x128xf32>
    %135 = math.rsqrt %134 : vector<1x128xf32>
    %136 = vector.broadcast %135 : vector<1x128xf32> to vector<16x128xf32>
    %137 = arith.mulf %127, %136 : vector<16x128xf32>
    %138 = vector.extract_strided_slice %121 {offsets = [0, 0], sizes = [1, 128], strides = [1, 1]} : vector<2x128xf32> to vector<1x128xf32>
    %139 = vector.broadcast %138 : vector<1x128xf32> to vector<16x128xf32>
    %140 = arith.mulf %137, %139 : vector<16x128xf32>
    %141 = vector.extract_strided_slice %121 {offsets = [1, 0], sizes = [1, 128], strides = [1, 1]} : vector<2x128xf32> to vector<1x128xf32>
    %142 = vector.broadcast %141 : vector<1x128xf32> to vector<16x128xf32>
    %143 = arith.addf %140, %142 : vector<16x128xf32>
    %c0_51 = arith.constant 0 : index
    %c0_52 = arith.constant 0 : index
    %144 = vector.load %arg7[%c0_51, %c0_52] : memref<128x256xf32, #tpu.memory_space<vmem>>, vector<128x256xf32>
    %c0_53 = arith.constant 0 : index
    %c0_54 = arith.constant 0 : index
    %145 = vector.load %arg8[%c0_53, %c0_54] : memref<1x256xf32, #tpu.memory_space<vmem>>, vector<1x256xf32>
    %146 = arith.truncf %143 : vector<16x128xf32> to vector<16x128xbf16>
    %147 = arith.truncf %144 : vector<128x256xf32> to vector<128x256xbf16>
    %cst_55 = arith.constant dense<0.000000e+00> : vector<16x256xf32>
    %148 = tpu.matmul %146, %147, %cst_55 {dimension_numbers = #tpu.dot_dimension_numbers<[1], [0], [0], [1], [0, 0, 1, 1], [], []>} : vector<16x128xbf16>, vector<128x256xbf16>, vector<16x256xf32> -> vector<16x256xf32>
    %149 = vector.broadcast %145 : vector<1x256xf32> to vector<16x256xf32>
    %150 = arith.addf %148, %149 : vector<16x256xf32>
    %cst_56 = arith.constant 0.000000e+00 : f32
    %151 = vector.broadcast %cst_56 : f32 to vector<16x256xf32>
    %152 = arith.maximumf %150, %151 : vector<16x256xf32>
    %c0_57 = arith.constant 0 : index
    %c0_58 = arith.constant 0 : index
    %153 = vector.load %arg9[%c0_57, %c0_58] : memref<256x128xf32, #tpu.memory_space<vmem>>, vector<256x128xf32>
    %c0_59 = arith.constant 0 : index
    %c0_60 = arith.constant 0 : index
    %154 = vector.load %arg10[%c0_59, %c0_60] : memref<1x128xf32, #tpu.memory_space<vmem>>, vector<1x128xf32>
    %155 = arith.truncf %152 : vector<16x256xf32> to vector<16x256xbf16>
    %156 = arith.truncf %153 : vector<256x128xf32> to vector<256x128xbf16>
    %cst_61 = arith.constant dense<0.000000e+00> : vector<16x128xf32>
    %157 = tpu.matmul %155, %156, %cst_61 {dimension_numbers = #tpu.dot_dimension_numbers<[1], [0], [0], [1], [0, 0, 1, 1], [], []>} : vector<16x256xbf16>, vector<256x128xbf16>, vector<16x128xf32> -> vector<16x128xf32>
    %158 = vector.broadcast %154 : vector<1x128xf32> to vector<16x128xf32>
    %159 = arith.addf %157, %158 : vector<16x128xf32>
    %160 = arith.addf %119, %159 : vector<16x128xf32>
    %161 = vector.shape_cast %160 : vector<16x128xf32> to vector<2x8x128xf32>
    %c0_62 = arith.constant 0 : index
    %c0_63 = arith.constant 0 : index
    %c0_64 = arith.constant 0 : index
    %162 = vector.load %arg11[%c0_62, %c0_63, %c0_64] : memref<2x8x128xf32, #tpu.memory_space<vmem>>, vector<2x8x128xf32>
    tpu.vector_store %arg11[%c0_62, %c0_63, %c0_64], %161 {strides = array<i32>} : memref<2x8x128xf32, #tpu.memory_space<vmem>>, vector<2x8x128xf32>,
    return
  }
  func.func @transform_0(%arg0: i32) -> (i32, i32, i32) {
    %c0_i32 = arith.constant 0 : i32
    %c0_i32_0 = arith.constant 0 : i32
    %c0_i32_1 = arith.constant 0 : i32
    %c0_i32_2 = arith.constant 0 : i32
    return %c0_i32, %c0_i32_0, %c0_i32_1 : i32, i32, i32
  }
  func.func @transform_1(%arg0: i32) -> (i32, i32, i32) {
    %c0_i32 = arith.constant 0 : i32
    %c0_i32_0 = arith.constant 0 : i32
    %c0_i32_1 = arith.constant 0 : i32
    %c0_i32_2 = arith.constant 0 : i32
    return %c0_i32, %c0_i32_0, %c0_i32_1 : i32, i32, i32
  }
  func.func @transform_2(%arg0: i32) -> (i32, i32) {
    %c0_i32 = arith.constant 0 : i32
    %c0_i32_0 = arith.constant 0 : i32
    %c0_i32_1 = arith.constant 0 : i32
    return %c0_i32, %c0_i32_0 : i32, i32
  }
  func.func @transform_3(%arg0: i32) -> (i32, i32) {
    %c0_i32 = arith.constant 0 : i32
    %c0_i32_0 = arith.constant 0 : i32
    %c0_i32_1 = arith.constant 0 : i32
    return %c0_i32, %c0_i32_0 : i32, i32
  }
  func.func @transform_4(%arg0: i32) -> (i32, i32) {
    %c0_i32 = arith.constant 0 : i32
    %c0_i32_0 = arith.constant 0 : i32
    %c0_i32_1 = arith.constant 0 : i32
    return %c0_i32, %c0_i32_0 : i32, i32
  }
  func.func @transform_5(%arg0: i32) -> (i32, i32) {
    %c0_i32 = arith.constant 0 : i32
    %c0_i32_0 = arith.constant 0 : i32
    %c0_i32_1 = arith.constant 0 : i32
    return %c0_i32, %c0_i32_0 : i32, i32
  }
  func.func @transform_6(%arg0: i32) -> (i32, i32) {
    %c0_i32 = arith.constant 0 : i32
    %c0_i32_0 = arith.constant 0 : i32
    %c0_i32_1 = arith.constant 0 : i32
    return %c0_i32, %c0_i32_0 : i32, i32
  }
  func.func @transform_7(%arg0: i32) -> (i32, i32) {
    %c0_i32 = arith.constant 0 : i32
    %c0_i32_0 = arith.constant 0 : i32
    %c0_i32_1 = arith.constant 0 : i32
    return %c0_i32, %c0_i32_0 : i32, i32
  }
  func.func @transform_8(%arg0: i32) -> (i32, i32) {
    %c0_i32 = arith.constant 0 : i32
    %c0_i32_0 = arith.constant 0 : i32
    %c0_i32_1 = arith.constant 0 : i32
    return %c0_i32, %c0_i32_0 : i32, i32
  }
  func.func @transform_9(%arg0: i32) -> (i32, i32) {
    %c0_i32 = arith.constant 0 : i32
    %c0_i32_0 = arith.constant 0 : i32
    %c0_i32_1 = arith.constant 0 : i32
    return %c0_i32, %c0_i32_0 : i32, i32
  }
  func.func @transform_10(%arg0: i32) -> (i32, i32, i32) {
    %c0_i32 = arith.constant 0 : i32
    %c0_i32_0 = arith.constant 0 : i32
    %c0_i32_1 = arith.constant 0 : i32
    %c0_i32_2 = arith.constant 0 : i32
    return %c0_i32, %c0_i32_0, %c0_i32_1 : i32, i32, i32
  }
}

</mosaic_0001>

<llo_original>
// kernel: encoder_layer.1
$region0: #{encoder_layer.1}
  #allocation0 [shape = 'u32[]', space=smem, size = 0x4, offset = 0x4, fixed_abs, tag = 'smem constant byte address 0x4 - core index']
  #allocation1 [shape = 'u32[72,128]{1,0:T(1,128)}', space=vmem, size = 0x9000, scoped, tag = 'internal scratch']
  %s0 = inlined_call_operand.hbm [shape: f32[2,8,128], index: 0, kind: input, shape index: {}]
  %s1 = inlined_call_operand.hbm [shape: f32[3,2,128], index: 1, kind: input, shape index: {}]
  %s2 = inlined_call_operand.hbm [shape: f32[128,384], index: 2, kind: input, shape index: {}]
  %s3 = inlined_call_operand.vmem [shape: f32[1,384], index: 3, kind: input, shape index: {}]
  %s4 = inlined_call_operand.hbm [shape: f32[128,128], index: 4, kind: input, shape index: {}]
  %s5 = inlined_call_operand.hbm [shape: f32[1,128], index: 5, kind: input, shape index: {}]
  %s6 = inlined_call_operand.hbm [shape: f32[128,256], index: 6, kind: input, shape index: {}]
  %s7 = inlined_call_operand.hbm [shape: f32[1,256], index: 7, kind: input, shape index: {}]
  %s8 = inlined_call_operand.hbm [shape: f32[256,128], index: 8, kind: input, shape index: {}]
  %s9 = inlined_call_operand.hbm [shape: f32[1,128], index: 9, kind: input, shape index: {}]
  %s10 = inlined_call_operand.hbm [shape: f32[2,8,128], index: 10, kind: output, shape index: {}]
  %s11 = sld [smem:[#allocation0]]
  $region86: #{encoder_layer.1} parent=0
    _
  %s13 = ssub.s32 1, %s11
  %s14 = scalar_select 0, %s13, %s11
  $region1: #{encoder_layer.1} parent=0
    #allocation2 [shape = 'u8[8192]{0}', space=vmem, size = 0x2000, scoped, tag = 'input window, operand 0, single buffered']
    #allocation3 [shape = 's32[1]{0}', space=sflag, size = 0x4, scoped, tag = 'scoped memory for encoder_layer.1']
    #allocation4 [shape = 's32[1]{0}', space=sflag, size = 0x4, scoped, tag = 'scoped memory for encoder_layer.1']
    #allocation5 [shape = 'u8[3072]{0}', space=vmem, size = 0xc00, scoped, tag = 'input window, operand 1, single buffered']
    #allocation6 [shape = 's32[1]{0}', space=sflag, size = 0x4, scoped, tag = 'scoped memory for encoder_layer.1']
    #allocation7 [shape = 'u8[196608]{0}', space=vmem, size = 0x30000, scoped, tag = 'input window, operand 2, single buffered']
    #allocation8 [shape = 'u8[65536]{0}', space=vmem, size = 0x10000, scoped, tag = 'input window, operand 4, single buffered']
    #allocation9 [shape = 's32[1]{0}', space=sflag, size = 0x4, scoped, tag = 'scoped memory for encoder_layer.1']
    #allocation10 [shape = 'u8[512]{0}', space=vmem, size = 0x400, scoped, tag = 'input window, operand 5, single buffered']
    #allocation11 [shape = 'u8[131072]{0}', space=vmem, size = 0x20000, scoped, tag = 'input window, operand 6, single buffered']
    #allocation12 [shape = 's32[1]{0}', space=sflag, size = 0x4, scoped, tag = 'scoped memory for encoder_layer.1']
    #allocation13 [shape = 'u8[1024]{0}', space=vmem, size = 0x400, scoped, tag = 'input window, operand 7, single buffered']
    #allocation14 [shape = 'u8[131072]{0}', space=vmem, size = 0x20000, scoped, tag = 'input window, operand 8, single buffered']
    #allocation15 [shape = 's32[1]{0}', space=sflag, size = 0x4, scoped, tag = 'scoped memory for encoder_layer.1']
    #allocation16 [shape = 'u8[512]{0}', space=vmem, size = 0x400, scoped, tag = 'input window, operand 9, single buffered']
    #allocation17 [shape = 'u8[8192]{0}', space=vmem, size = 0x2000, scoped, tag = 'output window, operand 0, single buffered']
    %15 = vsyncpa [#allocation3], 0
    %16 = vsyncpa [#allocation6], 0
    %17 = vsyncpa [#allocation9], 0
    %18 = vsyncpa [#allocation12], 0
    %19 = vsyncpa [#allocation15], 0
    %20 = vsyncpa [#allocation4], 0
    // Predicated region
    $region2: #{encoder_layer.1} parent=1 // pred_check
      _
    $region3: #{encoder_layer.1} parent=1 // pred_check_branch
      %22 = sbr.rel (0) target = $region5
    $region4: #{encoder_layer.1} parent=1 // pred_region
      %24 = vsyncadd [#allocation3], 0
      %s25 = sshll.u32 %s0, 4
      %s26 = int_to_ptr.hbm [resolvable:$true] %s25
      %s27 = sshll.u32 [#allocation2], 4
      %s28 = int_to_ptr.vmem [resolvable:$true] %s27
      %33 = dma.hbm_to_vmem [thread:$0]  %s26, 256, %s28, [#allocation3], 128, 128, 8
    $region5: #{encoder_layer.1} parent=1 // pred_fallthru
      _
    // Predicated region
    $region6: #{encoder_layer.1} parent=1 // pred_check
      _
    $region7: #{encoder_layer.1} parent=1 // pred_check_branch
      %35 = sbr.rel (0) target = $region9
    $region8: #{encoder_layer.1} parent=1 // pred_region
      %37 = vsyncadd [#allocation6], 0
      %s38 = sshll.u32 %s1, 4
      %s39 = int_to_ptr.hbm [resolvable:$true] %s38
      %s40 = sshll.u32 [#allocation5], 4
      %s41 = int_to_ptr.vmem [resolvable:$true] %s40
      %46 = dma.hbm_to_vmem [thread:$0]  %s39, 96, %s41, [#allocation6], 32, 32, 2
    $region9: #{encoder_layer.1} parent=1 // pred_fallthru
      _
    // Predicated region
    $region10: #{encoder_layer.1} parent=1 // pred_check
      _
    $region11: #{encoder_layer.1} parent=1 // pred_check_branch
      %48 = sbr.rel (0) target = $region13
    $region12: #{encoder_layer.1} parent=1 // pred_region
      %50 = vsyncadd [#allocation6], 0
      %s51 = sshll.u32 %s2, 4
      %s52 = int_to_ptr.hbm [resolvable:$true] %s51
      %s53 = sshll.u32 [#allocation7], 4
      %s54 = int_to_ptr.vmem [resolvable:$true] %s53
      %59 = dma.hbm_to_vmem [thread:$0]  %s52, 6144, %s54, [#allocation6], 384, 384, 24
    $region13: #{encoder_layer.1} parent=1 // pred_fallthru
      _
    // Predicated region
    $region14: #{encoder_layer.1} parent=1 // pred_check
      _
    $region15: #{encoder_layer.1} parent=1 // pred_check_branch
      %61 = sbr.rel (0) target = $region17
    $region16: #{encoder_layer.1} parent=1 // pred_region
      _
    $region17: #{encoder_layer.1} parent=1 // pred_fallthru
      _
    // Predicated region
    $region18: #{encoder_layer.1} parent=1 // pred_check
      _
    $region19: #{encoder_layer.1} parent=1 // pred_check_branch
      %63 = sbr.rel (0) target = $region21
    $region20: #{encoder_layer.1} parent=1 // pred_region
      %65 = vsyncadd [#allocation9], 0
      %s66 = sshll.u32 %s4, 4
      %s67 = int_to_ptr.hbm [resolvable:$true] %s66
      %s68 = sshll.u32 [#allocation8], 4
      %s69 = int_to_ptr.vmem [resolvable:$true] %s68
      %74 = dma.hbm_to_vmem [thread:$0]  %s67, 2048, %s69, [#allocation9], 128, 128, 8
    $region21: #{encoder_layer.1} parent=1 // pred_fallthru
      _
    // Predicated region
    $region22: #{encoder_layer.1} parent=1 // pred_check
      _
    $region23: #{encoder_layer.1} parent=1 // pred_check_branch
      %76 = sbr.rel (0) target = $region25
    $region24: #{encoder_layer.1} parent=1 // pred_region
      %78 = vsyncadd [#allocation9], 0
      %s80 = sshll.u32 %s5, 4
      %s81 = int_to_ptr.hbm [resolvable:$true] %s80
      %s82 = sshll.u32 [#allocation10], 4
      %s83 = int_to_ptr.vmem [resolvable:$true] %s82
      %85 = dma.hbm_to_vmem [thread:$0]  %s81, 16, %s83, [#allocation9]
    $region25: #{encoder_layer.1} parent=1 // pred_fallthru
      _
    // Predicated region
    $region26: #{encoder_layer.1} parent=1 // pred_check
      _
    $region27: #{encoder_layer.1} parent=1 // pred_check_branch
      %87 = sbr.rel (0) target = $region29
    $region28: #{encoder_layer.1} parent=1 // pred_region
      %89 = vsyncadd [#allocation12], 0
      %s90 = sshll.u32 %s6, 4
      %s91 = int_to_ptr.hbm [resolvable:$true] %s90
      %s92 = sshll.u32 [#allocation11], 4
      %s93 = int_to_ptr.vmem [resolvable:$true] %s92
      %98 = dma.hbm_to_vmem [thread:$0]  %s91, 4096, %s93, [#allocation12], 256, 256, 16
    $region29: #{encoder_layer.1} parent=1 // pred_fallthru
      _
    // Predicated region
    $region30: #{encoder_layer.1} parent=1 // pred_check
      _
    $region31: #{encoder_layer.1} parent=1 // pred_check_branch
      %100 = sbr.rel (0) target = $region33
    $region32: #{encoder_layer.1} parent=1 // pred_region
      %102 = vsyncadd [#allocation12], 0
      %s104 = sshll.u32 %s7, 4
      %s105 = int_to_ptr.hbm [resolvable:$true] %s104
      %s106 = sshll.u32 [#allocation13], 4
      %s107 = int_to_ptr.vmem [resolvable:$true] %s106
      %109 = dma.hbm_to_vmem [thread:$0]  %s105, 32, %s107, [#allocation12]
    $region33: #{encoder_layer.1} parent=1 // pred_fallthru
      _
    // Predicated region
    $region34: #{encoder_layer.1} parent=1 // pred_check
      _
    $region35: #{encoder_layer.1} parent=1 // pred_check_branch
      %111 = sbr.rel (0) target = $region37
    $region36: #{encoder_layer.1} parent=1 // pred_region
      %113 = vsyncadd [#allocation15], 0
      %s114 = sshll.u32 %s8, 4
      %s115 = int_to_ptr.hbm [resolvable:$true] %s114
      %s116 = sshll.u32 [#allocation14], 4
      %s117 = int_to_ptr.vmem [resolvable:$true] %s116
      %122 = dma.hbm_to_vmem [thread:$0]  %s115, 4096, %s117, [#allocation15], 128, 128, 8
    $region37: #{encoder_layer.1} parent=1 // pred_fallthru
      _
    // Predicated region
    $region38: #{encoder_layer.1} parent=1 // pred_check
      _
    $region39: #{encoder_layer.1} parent=1 // pred_check_branch
      %124 = sbr.rel (0) target = $region41
    $region40: #{encoder_layer.1} parent=1 // pred_region
      %126 = vsyncadd [#allocation15], 0
      %s128 = sshll.u32 %s9, 4
      %s129 = int_to_ptr.hbm [resolvable:$true] %s128
      %s130 = sshll.u32 [#allocation16], 4
      %s131 = int_to_ptr.vmem [resolvable:$true] %s130
      %133 = dma.hbm_to_vmem [thread:$0]  %s129, 16, %s131, [#allocation15]
    $region41: #{encoder_layer.1} parent=1 // pred_fallthru
      _
    // Predicated region
    $region42: #{encoder_layer.1} parent=1 // pred_check
      _
    $region43: #{encoder_layer.1} parent=1 // pred_check_branch
      %135 = sbr.rel (0) target = $region45
    $region44: #{encoder_layer.1} parent=1 // pred_region
      %137 = dma.done [#allocation3], 256
    $region45: #{encoder_layer.1} parent=1 // pred_fallthru
      _
    // Predicated region
    $region46: #{encoder_layer.1} parent=1 // pred_check
      _
    $region47: #{encoder_layer.1} parent=1 // pred_check_branch
      %139 = sbr.rel (0) target = $region49
    $region48: #{encoder_layer.1} parent=1 // pred_region
      %141 = dma.done [#allocation6], 96
    $region49: #{encoder_layer.1} parent=1 // pred_fallthru
      _
    // Predicated region
    $region50: #{encoder_layer.1} parent=1 // pred_check
      _
    $region51: #{encoder_layer.1} parent=1 // pred_check_branch
      %143 = sbr.rel (0) target = $region53
    $region52: #{encoder_layer.1} parent=1 // pred_region
      %145 = dma.done [#allocation6], 6144
    $region53: #{encoder_layer.1} parent=1 // pred_fallthru
      _
    // Predicated region
    $region54: #{encoder_layer.1} parent=1 // pred_check
      _
    $region55: #{encoder_layer.1} parent=1 // pred_check_branch
      %147 = sbr.rel (0) target = $region57
    $region56: #{encoder_layer.1} parent=1 // pred_region
      %149 = dma.done [#allocation9], 2048
    $region57: #{encoder_layer.1} parent=1 // pred_fallthru
      _
    // Predicated region
    $region58: #{encoder_layer.1} parent=1 // pred_check
      _
    $region59: #{encoder_layer.1} parent=1 // pred_check_branch
      %151 = sbr.rel (0) target = $region61
    $region60: #{encoder_layer.1} parent=1 // pred_region
      %153 = dma.done [#allocation9], 16
    $region61: #{encoder_layer.1} parent=1 // pred_fallthru
      _
    // Predicated region
    $region62: #{encoder_layer.1} parent=1 // pred_check
      _
    $region63: #{encoder_layer.1} parent=1 // pred_check_branch
      %155 = sbr.rel (0) target = $region65
    $region64: #{encoder_layer.1} parent=1 // pred_region
      %157 = dma.done [#allocation12], 4096
    $region65: #{encoder_layer.1} parent=1 // pred_fallthru
      _
    // Predicated region
    $region66: #{encoder_layer.1} parent=1 // pred_check
      _
    $region67: #{encoder_layer.1} parent=1 // pred_check_branch
      %159 = sbr.rel (0) target = $region69
    $region68: #{encoder_layer.1} parent=1 // pred_region
      %161 = dma.done [#allocation12], 32
    $region69: #{encoder_layer.1} parent=1 // pred_fallthru
      _
    // Predicated region
    $region70: #{encoder_layer.1} parent=1 // pred_check
      _
    $region71: #{encoder_layer.1} parent=1 // pred_check_branch
      %163 = sbr.rel (0) target = $region73
    $region72: #{encoder_layer.1} parent=1 // pred_region
      %165 = dma.done [#allocation15], 4096
    $region73: #{encoder_layer.1} parent=1 // pred_fallthru
      _
    // Predicated region
    $region74: #{encoder_layer.1} parent=1 // pred_check
      _
    $region75: #{encoder_layer.1} parent=1 // pred_check_branch
      %167 = sbr.rel (0) target = $region77
    $region76: #{encoder_layer.1} parent=1 // pred_region
      %169 = dma.done [#allocation15], 16
    $region77: #{encoder_layer.1} parent=1 // pred_fallthru
      _
    %v171 = vld [vmem:[#allocation2] sm:$0xff]
    %v172 = vld [vmem:[#allocation2 + $0x8] sm:$0xff]
    %v173 = vld [vmem:[#allocation5] sm:$0x3]
    %v174 = vadd.f32 %v171, %v172
    %v175 = vrot.slane %v174, 4
    %v176 = vadd.f32 %v174, %v175
    %v177 = vrot.slane %v176, 2
    %v178 = vadd.f32 %v176, %v177
    %v179 = vrot.slane %v178, 1
    %v180 = vadd.f32 %v178, %v179
    %v181 = vrcp.pop 16.0
    %v182 = vmul.f32 16.0, %v181
    %v183 = vsub.f32 1.0, %v182
    %v184 = vmul.f32 %v181, %v183
    %v185 = vadd.f32 %v181, %v184
    %vm186 = vweird.f32 %v181
    %v187 = vsel %vm186, %v181, %v185
    %v188 = vmul.f32 %v180, %v187
    %v189 = vsub.f32 %v171, %v188
    %v190 = vsub.f32 %v172, %v188
    %v191 = vmul.f32 %v189, %v189
    %v192 = vmul.f32 %v190, %v190
    %v193 = vadd.f32 %v191, %v192
    %v194 = vrot.slane %v193, 4
    %v195 = vadd.f32 %v193, %v194
    %v196 = vrot.slane %v195, 2
    %v197 = vadd.f32 %v195, %v196
    %v198 = vrot.slane %v197, 1
    %v199 = vadd.f32 %v197, %v198
    %v200 = vmul.f32 %v199, %v187
    %v201 = vadd.f32 %v200, 1e-05
    %v202 = vrsqrt.pop %v201
    %v203 = vmul.f32 %v202, %v201
    %v204 = vmul.f32 %v203, %v202
    %v205 = vmul.f32 0.5, %v204
    %v206 = vsub.f32 1.5, %v205
    %v207 = vmul.f32 %v202, %v206
    %vm208 = vweird.f32 %v201
    %vm209 = vweird.f32 %v202
    %vm210 = vmor %vm208, %vm209
    %v211 = vsel %vm210, %v202, %v207
    %v212 = vmul.f32 %v189, %v211
    %v213 = vmul.f32 %v190, %v211
    %v214 = vperm.slane %v173, 0
    %v215 = vmul.f32 %v212, %v214
    %v216 = vmul.f32 %v213, %v214
    %v217 = vperm.slane %v173, 1
    %v218 = vadd.f32 %v215, %v217
    %v219 = vadd.f32 %v216, %v217
    %v220 = vld [vmem:[#allocation7] sm:$0xff]
    %v221 = vld [vmem:[#allocation7 + $0x8] sm:$0xff]
    %v222 = vld [vmem:[#allocation7 + $0x10] sm:$0xff]
    %v223 = vld [vmem:[#allocation7 + $0x18] sm:$0xff]
    %v224 = vld [vmem:[#allocation7 + $0x20] sm:$0xff]
    %v225 = vld [vmem:[#allocation7 + $0x28] sm:$0xff]
    %v226 = vld [vmem:[#allocation7 + $0x30] sm:$0xff]
    %v227 = vld [vmem:[#allocation7 + $0x38] sm:$0xff]
    %v228 = vld [vmem:[#allocation7 + $0x40] sm:$0xff]
    %v229 = vld [vmem:[#allocation7 + $0x48] sm:$0xff]
    %v230 = vld [vmem:[#allocation7 + $0x50] sm:$0xff]
    %v231 = vld [vmem:[#allocation7 + $0x58] sm:$0xff]
    %v232 = vld [vmem:[#allocation7 + $0x60] sm:$0xff]
    %v233 = vld [vmem:[#allocation7 + $0x68] sm:$0xff]
    %v234 = vld [vmem:[#allocation7 + $0x70] sm:$0xff]
    %v235 = vld [vmem:[#allocation7 + $0x78] sm:$0xff]
    %v236 = vld [vmem:[#allocation7 + $0x80] sm:$0xff]
    %v237 = vld [vmem:[#allocation7 + $0x88] sm:$0xff]
    %v238 = vld [vmem:[#allocation7 + $0x90] sm:$0xff]
    %v239 = vld [vmem:[#allocation7 + $0x98] sm:$0xff]
    %v240 = vld [vmem:[#allocation7 + $0xa0] sm:$0xff]
    %v241 = vld [vmem:[#allocation7 + $0xa8] sm:$0xff]
    %v242 = vld [vmem:[#allocation7 + $0xb0] sm:$0xff]
    %v243 = vld [vmem:[#allocation7 + $0xb8] sm:$0xff]
    %v244 = vld [vmem:[#allocation7 + $0xc0] sm:$0xff]
    %v245 = vld [vmem:[#allocation7 + $0xc8] sm:$0xff]
    %v246 = vld [vmem:[#allocation7 + $0xd0] sm:$0xff]
    %v247 = vld [vmem:[#allocation7 + $0xd8] sm:$0xff]
    %v248 = vld [vmem:[#allocation7 + $0xe0] sm:$0xff]
    %v249 = vld [vmem:[#allocation7 + $0xe8] sm:$0xff]
    %v250 = vld [vmem:[#allocation7 + $0xf0] sm:$0xff]
    %v251 = vld [vmem:[#allocation7 + $0xf8] sm:$0xff]
    %v252 = vld [vmem:[#allocation7 + $0x100] sm:$0xff]
    %v253 = vld [vmem:[#allocation7 + $0x108] sm:$0xff]
    %v254 = vld [vmem:[#allocation7 + $0x110] sm:$0xff]
    %v255 = vld [vmem:[#allocation7 + $0x118] sm:$0xff]
    %v256 = vld [vmem:[#allocation7 + $0x120] sm:$0xff]
    %v257 = vld [vmem:[#allocation7 + $0x128] sm:$0xff]
    %v258 = vld [vmem:[#allocation7 + $0x130] sm:$0xff]
    %v259 = vld [vmem:[#allocation7 + $0x138] sm:$0xff]
    %v260 = vld [vmem:[#allocation7 + $0x140] sm:$0xff]
    %v261 = vld [vmem:[#allocation7 + $0x148] sm:$0xff]
    %v262 = vld [vmem:[#allocation7 + $0x150] sm:$0xff]
    %v263 = vld [vmem:[#allocation7 + $0x158] sm:$0xff]
    %v264 = vld [vmem:[#allocation7 + $0x160] sm:$0xff]
    %v265 = vld [vmem:[#allocation7 + $0x168] sm:$0xff]
    %v266 = vld [vmem:[#allocation7 + $0x170] sm:$0xff]
    %v267 = vld [vmem:[#allocation7 + $0x178] sm:$0xff]
    %v268 = vld [vmem:[%s3] sm:$0x7]
    %v269 = vpack.c.bf16 %v219, %v218
    %v270 = vpack.c.bf16 %v223, %v220
    %v271 = vpack.c.bf16 %v224, %v221
    %v272 = vpack.c.bf16 %v225, %v222
    %v273 = vpack.c.bf16 %v229, %v226
    %v274 = vpack.c.bf16 %v230, %v227
    %v275 = vpack.c.bf16 %v231, %v228
    %v276 = vpack.c.bf16 %v235, %v232
    %v277 = vpack.c.bf16 %v236, %v233
    %v278 = vpack.c.bf16 %v237, %v234
    %v279 = vpack.c.bf16 %v241, %v238
    %v280 = vpack.c.bf16 %v242, %v239
    %v281 = vpack.c.bf16 %v243, %v240
    %v282 = vpack.c.bf16 %v247, %v244
    %v283 = vpack.c.bf16 %v248, %v245
    %v284 = vpack.c.bf16 %v249, %v246
    %v285 = vpack.c.bf16 %v253, %v250
    %v286 = vpack.c.bf16 %v254, %v251
    %v287 = vpack.c.bf16 %v255, %v252
    %v288 = vpack.c.bf16 %v259, %v256
    %v289 = vpack.c.bf16 %v260, %v257
    %v290 = vpack.c.bf16 %v261, %v258
    %v291 = vpack.c.bf16 %v265, %v262
    %v292 = vpack.c.bf16 %v266, %v263
    %v293 = vpack.c.bf16 %v267, %v264
    %v295 = vperm.slane %v268, 0
    %v296 = vperm.slane %v268, 1
    %v297 = vperm.slane %v268, 2
    %301 = vmatpush.bf16.msra.mxu0 %v291
    %302 = vmatpush.bf16.msra.mxu0 %v288
    %303 = vmatpush.bf16.msra.mxu0 %v285
    %304 = vmatpush.bf16.msra.mxu0 %v282
    %305 = vmatpush.bf16.msra.mxu0 %v279
    %306 = vmatpush.bf16.msra.mxu0 %v276
    %307 = vmatpush.bf16.msra.mxu0 %v273
    %308 = vmatpush.bf16.msra.mxu0 %v270
    %309 = vmatmul.bf16.gmra.mxu0 %v269
    %v310 = vpop.f32.mrf.mxu0
    %v311 = vadd.f32 %v295, %v310
    %v312 = vpop.f32.mrf.mxu0
    %v313 = vadd.f32 %v295, %v312
    %314 = vdwg.mxu0
    %315 = vmatpush.bf16.msra.mxu0 %v292
    %316 = vmatpush.bf16.msra.mxu0 %v289
    %317 = vmatpush.bf16.msra.mxu0 %v286
    %318 = vmatpush.bf16.msra.mxu0 %v283
    %319 = vmatpush.bf16.msra.mxu0 %v280
    %320 = vmatpush.bf16.msra.mxu0 %v277
    %321 = vmatpush.bf16.msra.mxu0 %v274
    %322 = vmatpush.bf16.msra.mxu0 %v271
    %323 = vmatmul.bf16.gmra.mxu0 %v269
    %v324 = vpop.f32.mrf.mxu0
    %v325 = vadd.f32 %v296, %v324
    %v326 = vpop.f32.mrf.mxu0
    %v327 = vadd.f32 %v296, %v326
    %328 = vdwg.mxu0
    %329 = vmatpush.bf16.msra.mxu0 %v293
    %330 = vmatpush.bf16.msra.mxu0 %v290
    %331 = vmatpush.bf16.msra.mxu0 %v287
    %332 = vmatpush.bf16.msra.mxu0 %v284
    %333 = vmatpush.bf16.msra.mxu0 %v281
    %334 = vmatpush.bf16.msra.mxu0 %v278
    %335 = vmatpush.bf16.msra.mxu0 %v275
    %336 = vmatpush.bf16.msra.mxu0 %v272
    %337 = vmatmul.bf16.gmra.mxu0 %v269
    %v338 = vpop.f32.mrf.mxu0
    %v339 = vadd.f32 %v297, %v338
    %v340 = vpop.f32.mrf.mxu0
    %v341 = vadd.f32 %v297, %v340
    %342 = vdwg.mxu0
    %v343 = vpack.c.bf16 %v311, %v311
    %v344 = vpack.c.bf16 %v313, %v313
    %v345 = vpack.c.bf16 %v325, %v325
    %v346 = vpack.c.bf16 %v327, %v327
    %347 = vmatpush.bf16.xpose.msra.mxu0 0
    %348 = vmatpush.bf16.xpose.msra.mxu0 0
    %349 = vmatpush.bf16.xpose.msra.mxu0 0
    %350 = vmatpush.bf16.xpose.msra.mxu0 0
    %351 = vmatpush.bf16.xpose.msra.mxu0 0
    %352 = vmatpush.bf16.xpose.msra.mxu0 0
    %353 = vmatpush.bf16.xpose.msra.mxu0 0
    %354 = vmatpush.bf16.xpose.msra.mxu0 %v345
    %355 = vmatmul.bf16.gmra.mxu0 %v343
    %v356 = vpop.f32.mrf.mxu0
    %v357 = vadd.f32 0.0, %v356
    %v358 = vpop.f32.mrf.mxu0
    %359 = vdwg.mxu0
    %360 = vmatpush.bf16.xpose.msra.mxu0 0
    %361 = vmatpush.bf16.xpose.msra.mxu0 0
    %362 = vmatpush.bf16.xpose.msra.mxu0 0
    %363 = vmatpush.bf16.xpose.msra.mxu0 0
    %364 = vmatpush.bf16.xpose.msra.mxu0 0
    %365 = vmatpush.bf16.xpose.msra.mxu0 0
    %366 = vmatpush.bf16.xpose.msra.mxu0 0
    %367 = vmatpush.bf16.xpose.msra.mxu0 %v346
    %368 = vmatmul.bf16.gmra.mxu0 %v344
    %v369 = vpop.f32.mrf.mxu0
    %v370 = vadd.f32 0.0, %v369
    %v371 = vpop.f32.mrf.mxu0
    %372 = vdwg.mxu0
    %vm373 = vcmask 64512
    %v374 = vsel %vm373, %v357, -inf
    %375 = vmax.xlane.f32.xlu0 %v374
    %v376 = vpop.xlane.xlu0 %375
    %v377 = vsel %vm373, %v370, -inf
    %378 = vmax.xlane.f32.xlu0 %v377
    %v379 = vpop.xlane.xlu0 %378
    %v380 = vsub.f32 %v357, %v376
    %v381 = vsub.f32 %v370, %v379
    %v382 = vmul.f32 %v380, 1.442695
    %v383 = vpow.pop %v382
    %v384 = vmul.f32 %v381, 1.442695
    %v385 = vpow.pop %v384
    %v386 = vsel %vm373, %v383, 0.0
    %387 = vadd.xlane.f32.xlu0 %v386
    %v388 = vpop.xlane.xlu0 %387
    %v389 = vsel %vm373, %v385, 0.0
    %390 = vadd.xlane.f32.xlu0 %v389
    %v391 = vpop.xlane.xlu0 %390
    %v392 = vrcp.pop %v388
    %v393 = vmul.f32 %v388, %v392
    %v394 = vsub.f32 1.0, %v393
    %v395 = vmul.f32 %v392, %v394
    %v396 = vadd.f32 %v392, %v395
    %vm397 = vweird.f32 %v388
    %vm398 = vweird.f32 %v392
    %vm399 = vmor %vm397, %vm398
    %v400 = vsel %vm399, %v392, %v396
    %v401 = vand.u32 2147483647, %v388
    %vm402 = vcmp.eq.f32.partialorder %v401, 8.507059e+37
    %v403 = vand.u32 %v388, 2147483648
    %v404 = vor.u32 1.1754944e-38, %v403
    %v405 = vsel %vm402, %v404, %v400
    %v406 = vmul.f32 %v383, %v405
    %v407 = vrcp.pop %v391
    %v408 = vmul.f32 %v391, %v407
    %v409 = vsub.f32 1.0, %v408
    %v410 = vmul.f32 %v407, %v409
    %v411 = vadd.f32 %v407, %v410
    %vm412 = vweird.f32 %v391
    %vm413 = vweird.f32 %v407
    %vm414 = vmor %vm412, %vm413
    %v415 = vsel %vm414, %v407, %v411
    %v416 = vand.u32 2147483647, %v391
    %vm417 = vcmp.eq.f32.partialorder %v416, 8.507059e+37
    %v418 = vand.u32 %v391, 2147483648
    %v419 = vor.u32 1.1754944e-38, %v418
    %v420 = vsel %vm417, %v419, %v415
    %v421 = vmul.f32 %v385, %v420
    %v422 = vpack.c.bf16 %v406, %v406
    %v423 = vpack.c.bf16 %v421, %v421
    %v424 = vpack.c.bf16 %v339, %v339
    %v425 = vpack.c.bf16 %v341, %v341
    %v427 = vsel %vm373, %v422, 0
    %vm429 = vcmask 1043456
    %v431 = vsel %vm429, %v424, 0
    %433 = vmatpush.bf16.msra.mxu0 0
    %434 = vmatpush.bf16.msra.mxu0 0
    %435 = vmatpush.bf16.msra.mxu0 0
    %436 = vmatpush.bf16.msra.mxu0 0
    %437 = vmatpush.bf16.msra.mxu0 0
    %438 = vmatpush.bf16.msra.mxu0 0
    %439 = vmatpush.bf16.msra.mxu0 0
    %440 = vmatpush.bf16.msra.mxu0 %v431
    %441 = vmatmul.bf16.gmra.mxu0 %v427
    %v442 = vpop.f32.mrf.mxu0
    %v443 = vadd.f32 0.0, %v442
    %v444 = vpop.f32.mrf.mxu0
    %445 = vdwg.mxu0
    %v447 = vsel %vm373, %v423, 0
    %v450 = vsel %vm429, %v425, 0
    %452 = vmatpush.bf16.msra.mxu0 0
    %453 = vmatpush.bf16.msra.mxu0 0
    %454 = vmatpush.bf16.msra.mxu0 0
    %455 = vmatpush.bf16.msra.mxu0 0
    %456 = vmatpush.bf16.msra.mxu0 0
    %457 = vmatpush.bf16.msra.mxu0 0
    %458 = vmatpush.bf16.msra.mxu0 0
    %459 = vmatpush.bf16.msra.mxu0 %v450
    %460 = vmatmul.bf16.gmra.mxu0 %v447
    %v461 = vpop.f32.mrf.mxu0
    %v462 = vadd.f32 0.0, %v461
    %v463 = vpop.f32.mrf.mxu0
    %464 = vdwg.mxu0
    %v465 = vld [vmem:[#allocation8] sm:$0xff]
    %v466 = vld [vmem:[#allocation8 + $0x8] sm:$0xff]
    %v467 = vld [vmem:[#allocation8 + $0x10] sm:$0xff]
    %v468 = vld [vmem:[#allocation8 + $0x18] sm:$0xff]
    %v469 = vld [vmem:[#allocation8 + $0x20] sm:$0xff]
    %v470 = vld [vmem:[#allocation8 + $0x28] sm:$0xff]
    %v471 = vld [vmem:[#allocation8 + $0x30] sm:$0xff]
    %v472 = vld [vmem:[#allocation8 + $0x38] sm:$0xff]
    %v473 = vld [vmem:[#allocation8 + $0x40] sm:$0xff]
    %v474 = vld [vmem:[#allocation8 + $0x48] sm:$0xff]
    %v475 = vld [vmem:[#allocation8 + $0x50] sm:$0xff]
    %v476 = vld [vmem:[#allocation8 + $0x58] sm:$0xff]
    %v477 = vld [vmem:[#allocation8 + $0x60] sm:$0xff]
    %v478 = vld [vmem:[#allocation8 + $0x68] sm:$0xff]
    %v479 = vld [vmem:[#allocation8 + $0x70] sm:$0xff]
    %v480 = vld [vmem:[#allocation8 + $0x78] sm:$0xff]
    %v481 = vld [vmem:[#allocation10] sm:$0x1]
    %v482 = vpack.c.bf16 %v462, %v443
    %v483 = vpack.c.bf16 %v466, %v465
    %v484 = vpack.c.bf16 %v468, %v467
    %v485 = vpack.c.bf16 %v470, %v469
    %v486 = vpack.c.bf16 %v472, %v471
    %v487 = vpack.c.bf16 %v474, %v473
    %v488 = vpack.c.bf16 %v476, %v475
    %v489 = vpack.c.bf16 %v478, %v477
    %v490 = vpack.c.bf16 %v480, %v479
    %v492 = vperm.slane %v481, 0
    %494 = vmatpush.bf16.msra.mxu0 %v490
    %495 = vmatpush.bf16.msra.mxu0 %v489
    %496 = vmatpush.bf16.msra.mxu0 %v488
    %497 = vmatpush.bf16.msra.mxu0 %v487
    %498 = vmatpush.bf16.msra.mxu0 %v486
    %499 = vmatpush.bf16.msra.mxu0 %v485
    %500 = vmatpush.bf16.msra.mxu0 %v484
    %501 = vmatpush.bf16.msra.mxu0 %v483
    %502 = vmatmul.bf16.gmra.mxu0 %v482
    %v503 = vpop.f32.mrf.mxu0
    %v504 = vadd.f32 %v492, %v503
    %v505 = vpop.f32.mrf.mxu0
    %v506 = vadd.f32 %v492, %v505
    %507 = vdwg.mxu0
    %v508 = vadd.f32 %v171, %v504
    %v509 = vadd.f32 %v172, %v506
    %s510 = scalar_lea.vmem [#allocation5], 2
    %v511 = vld [vmem:[%s510] sm:$0x3]
    %v512 = vadd.f32 %v508, %v509
    %v513 = vrot.slane %v512, 4
    %v514 = vadd.f32 %v512, %v513
    %v515 = vrot.slane %v514, 2
    %v516 = vadd.f32 %v514, %v515
    %v517 = vrot.slane %v516, 1
    %v518 = vadd.f32 %v516, %v517
    %v519 = vmul.f32 %v518, %v187
    %v520 = vsub.f32 %v508, %v519
    %v521 = vsub.f32 %v509, %v519
    %v522 = vmul.f32 %v520, %v520
    %v523 = vmul.f32 %v521, %v521
    %v524 = vadd.f32 %v522, %v523
    %v525 = vrot.slane %v524, 4
    %v526 = vadd.f32 %v524, %v525
    %v527 = vrot.slane %v526, 2
    %v528 = vadd.f32 %v526, %v527
    %v529 = vrot.slane %v528, 1
    %v530 = vadd.f32 %v528, %v529
    %v531 = vmul.f32 %v530, %v187
    %v532 = vadd.f32 %v531, 1e-05
    %v533 = vrsqrt.pop %v532
    %v534 = vmul.f32 %v533, %v532
    %v535 = vmul.f32 %v534, %v533
    %v536 = vmul.f32 0.5, %v535
    %v537 = vsub.f32 1.5, %v536
    %v538 = vmul.f32 %v533, %v537
    %vm539 = vweird.f32 %v532
    %vm540 = vweird.f32 %v533
    %vm541 = vmor %vm539, %vm540
    %v542 = vsel %vm541, %v533, %v538
    %v543 = vmul.f32 %v520, %v542
    %v544 = vmul.f32 %v521, %v542
    %v545 = vperm.slane %v511, 0
    %v546 = vmul.f32 %v543, %v545
    %v547 = vmul.f32 %v544, %v545
    %v548 = vperm.slane %v511, 1
    %v549 = vadd.f32 %v546, %v548
    %v550 = vadd.f32 %v547, %v548
    %v551 = vld [vmem:[#allocation7] sm:$0xff]
    %v552 = vld [vmem:[#allocation7 + $0x8] sm:$0xff]
    %v553 = vld [vmem:[#allocation7 + $0x10] sm:$0xff]
    %v554 = vld [vmem:[#allocation7 + $0x18] sm:$0xff]
    %v555 = vld [vmem:[#allocation7 + $0x20] sm:$0xff]
    %v556 = vld [vmem:[#allocation7 + $0x28] sm:$0xff]
    %v557 = vld [vmem:[#allocation7 + $0x30] sm:$0xff]
    %v558 = vld [vmem:[#allocation7 + $0x38] sm:$0xff]
    %v559 = vld [vmem:[#allocation7 + $0x40] sm:$0xff]
    %v560 = vld [vmem:[#allocation7 + $0x48] sm:$0xff]
    %v561 = vld [vmem:[#allocation7 + $0x50] sm:$0xff]
    %v562 = vld [vmem:[#allocation7 + $0x58] sm:$0xff]
    %v563 = vld [vmem:[#allocation7 + $0x60] sm:$0xff]
    %v564 = vld [vmem:[#allocation7 + $0x68] sm:$0xff]
    %v565 = vld [vmem:[#allocation7 + $0x70] sm:$0xff]
    %v566 = vld [vmem:[#allocation7 + $0x78] sm:$0xff]
    %v567 = vld [vmem:[#allocation7 + $0x80] sm:$0xff]
    %v568 = vld [vmem:[#allocation7 + $0x88] sm:$0xff]
    %v569 = vld [vmem:[#allocation7 + $0x90] sm:$0xff]
    %v570 = vld [vmem:[#allocation7 + $0x98] sm:$0xff]
    %v571 = vld [vmem:[#allocation7 + $0xa0] sm:$0xff]
    %v572 = vld [vmem:[#allocation7 + $0xa8] sm:$0xff]
    %v573 = vld [vmem:[#allocation7 + $0xb0] sm:$0xff]
    %v574 = vld [vmem:[#allocation7 + $0xb8] sm:$0xff]
    %v575 = vld [vmem:[#allocation7 + $0xc0] sm:$0xff]
    %v576 = vld [vmem:[#allocation7 + $0xc8] sm:$0xff]
    %v577 = vld [vmem:[#allocation7 + $0xd0] sm:$0xff]
    %v578 = vld [vmem:[#allocation7 + $0xd8] sm:$0xff]
    %v579 = vld [vmem:[#allocation7 + $0xe0] sm:$0xff]
    %v580 = vld [vmem:[#allocation7 + $0xe8] sm:$0xff]
    %v581 = vld [vmem:[#allocation7 + $0xf0] sm:$0xff]
    %v582 = vld [vmem:[#allocation7 + $0xf8] sm:$0xff]
    %v583 = vld [vmem:[#allocation7 + $0x100] sm:$0xff]
    %v584 = vld [vmem:[#allocation7 + $0x108] sm:$0xff]
    %v585 = vld [vmem:[#allocation7 + $0x110] sm:$0xff]
    %v586 = vld [vmem:[#allocation7 + $0x118] sm:$0xff]
    %v587 = vld [vmem:[#allocation7 + $0x120] sm:$0xff]
    %v588 = vld [vmem:[#allocation7 + $0x128] sm:$0xff]
    %v589 = vld [vmem:[#allocation7 + $0x130] sm:$0xff]
    %v590 = vld [vmem:[#allocation7 + $0x138] sm:$0xff]
    %v591 = vld [vmem:[#allocation7 + $0x140] sm:$0xff]
    %v592 = vld [vmem:[#allocation7 + $0x148] sm:$0xff]
    %v593 = vld [vmem:[#allocation7 + $0x150] sm:$0xff]
    %v594 = vld [vmem:[#allocation7 + $0x158] sm:$0xff]
    %v595 = vld [vmem:[#allocation7 + $0x160] sm:$0xff]
    %v596 = vld [vmem:[#allocation7 + $0x168] sm:$0xff]
    %v597 = vld [vmem:[#allocation7 + $0x170] sm:$0xff]
    %v598 = vld [vmem:[#allocation7 + $0x178] sm:$0xff]
    %v599 = vld [vmem:[%s3] sm:$0x7]
    %v600 = vpack.c.bf16 %v550, %v549
    %v601 = vpack.c.bf16 %v554, %v551
    %v602 = vpack.c.bf16 %v555, %v552
    %v603 = vpack.c.bf16 %v556, %v553
    %v604 = vpack.c.bf16 %v560, %v557
    %v605 = vpack.c.bf16 %v561, %v558
    %v606 = vpack.c.bf16 %v562, %v559
    %v607 = vpack.c.bf16 %v566, %v563
    %v608 = vpack.c.bf16 %v567, %v564
    %v609 = vpack.c.bf16 %v568, %v565
    %v610 = vpack.c.bf16 %v572, %v569
    %v611 = vpack.c.bf16 %v573, %v570
    %v612 = vpack.c.bf16 %v574, %v571
    %v613 = vpack.c.bf16 %v578, %v575
    %v614 = vpack.c.bf16 %v579, %v576
    %v615 = vpack.c.bf16 %v580, %v577
    %v616 = vpack.c.bf16 %v584, %v581
    %v617 = vpack.c.bf16 %v585, %v582
    %v618 = vpack.c.bf16 %v586, %v583
    %v619 = vpack.c.bf16 %v590, %v587
    %v620 = vpack.c.bf16 %v591, %v588
    %v621 = vpack.c.bf16 %v592, %v589
    %v622 = vpack.c.bf16 %v596, %v593
    %v623 = vpack.c.bf16 %v597, %v594
    %v624 = vpack.c.bf16 %v598, %v595
    %v626 = vperm.slane %v599, 0
    %v627 = vperm.slane %v599, 1
    %v628 = vperm.slane %v599, 2
    %632 = vmatpush.bf16.msra.mxu0 %v622
    %633 = vmatpush.bf16.msra.mxu0 %v619
    %634 = vmatpush.bf16.msra.mxu0 %v616
    %635 = vmatpush.bf16.msra.mxu0 %v613
    %636 = vmatpush.bf16.msra.mxu0 %v610
    %637 = vmatpush.bf16.msra.mxu0 %v607
    %638 = vmatpush.bf16.msra.mxu0 %v604
    %639 = vmatpush.bf16.msra.mxu0 %v601
    %640 = vmatmul.bf16.gmra.mxu0 %v600
    %v641 = vpop.f32.mrf.mxu0
    %v642 = vadd.f32 %v626, %v641
    %v643 = vpop.f32.mrf.mxu0
    %v644 = vadd.f32 %v626, %v643
    %645 = vdwg.mxu0
    %646 = vmatpush.bf16.msra.mxu0 %v623
    %647 = vmatpush.bf16.msra.mxu0 %v620
    %648 = vmatpush.bf16.msra.mxu0 %v617
    %649 = vmatpush.bf16.msra.mxu0 %v614
    %650 = vmatpush.bf16.msra.mxu0 %v611
    %651 = vmatpush.bf16.msra.mxu0 %v608
    %652 = vmatpush.bf16.msra.mxu0 %v605
    %653 = vmatpush.bf16.msra.mxu0 %v602
    %654 = vmatmul.bf16.gmra.mxu0 %v600
    %v655 = vpop.f32.mrf.mxu0
    %v656 = vadd.f32 %v627, %v655
    %v657 = vpop.f32.mrf.mxu0
    %v658 = vadd.f32 %v627, %v657
    %659 = vdwg.mxu0
    %660 = vmatpush.bf16.msra.mxu0 %v624
    %661 = vmatpush.bf16.msra.mxu0 %v621
    %662 = vmatpush.bf16.msra.mxu0 %v618
    %663 = vmatpush.bf16.msra.mxu0 %v615
    %664 = vmatpush.bf16.msra.mxu0 %v612
    %665 = vmatpush.bf16.msra.mxu0 %v609
    %666 = vmatpush.bf16.msra.mxu0 %v606
    %667 = vmatpush.bf16.msra.mxu0 %v603
    %668 = vmatmul.bf16.gmra.mxu0 %v600
    %v669 = vpop.f32.mrf.mxu0
    %v670 = vadd.f32 %v628, %v669
    %v671 = vpop.f32.mrf.mxu0
    %v672 = vadd.f32 %v628, %v671
    %673 = vdwg.mxu0
    %v674 = vpack.c.bf16 %v642, %v642
    %v675 = vpack.c.bf16 %v644, %v644
    %v676 = vpack.c.bf16 %v656, %v656
    %v677 = vpack.c.bf16 %v658, %v658
    %678 = vmatpush.bf16.xpose.msra.mxu0 0
    %679 = vmatpush.bf16.xpose.msra.mxu0 0
    %680 = vmatpush.bf16.xpose.msra.mxu0 0
    %681 = vmatpush.bf16.xpose.msra.mxu0 0
    %682 = vmatpush.bf16.xpose.msra.mxu0 0
    %683 = vmatpush.bf16.xpose.msra.mxu0 0
    %684 = vmatpush.bf16.xpose.msra.mxu0 0
    %685 = vmatpush.bf16.xpose.msra.mxu0 %v676
    %686 = vmatmul.bf16.gmra.mxu0 %v674
    %v687 = vpop.f32.mrf.mxu0
    %v688 = vadd.f32 0.0, %v687
    %v689 = vpop.f32.mrf.mxu0
    %690 = vdwg.mxu0
    %691 = vmatpush.bf16.xpose.msra.mxu0 0
    %692 = vmatpush.bf16.xpose.msra.mxu0 0
    %693 = vmatpush.bf16.xpose.msra.mxu0 0
    %694 = vmatpush.bf16.xpose.msra.mxu0 0
    %695 = vmatpush.bf16.xpose.msra.mxu0 0
    %696 = vmatpush.bf16.xpose.msra.mxu0 0
    %697 = vmatpush.bf16.xpose.msra.mxu0 0
    %698 = vmatpush.bf16.xpose.msra.mxu0 %v677
    %699 = vmatmul.bf16.gmra.mxu0 %v675
    %v700 = vpop.f32.mrf.mxu0
    %v701 = vadd.f32 0.0, %v700
    %v702 = vpop.f32.mrf.mxu0
    %703 = vdwg.mxu0
    %v704 = vsel %vm373, %v688, -inf
    %705 = vmax.xlane.f32.xlu0 %v704
    %v706 = vpop.xlane.xlu0 %705
    %v707 = vsel %vm373, %v701, -inf
    %708 = vmax.xlane.f32.xlu0 %v707
    %v709 = vpop.xlane.xlu0 %708
    %v710 = vsub.f32 %v688, %v706
    %v711 = vsub.f32 %v701, %v709
    %v712 = vmul.f32 %v710, 1.442695
    %v713 = vpow.pop %v712
    %v714 = vmul.f32 %v711, 1.442695
    %v715 = vpow.pop %v714
    %v716 = vsel %vm373, %v713, 0.0
    %717 = vadd.xlane.f32.xlu0 %v716
    %v718 = vpop.xlane.xlu0 %717
    %v719 = vsel %vm373, %v715, 0.0
    %720 = vadd.xlane.f32.xlu0 %v719
    %v721 = vpop.xlane.xlu0 %720
    %v722 = vrcp.pop %v718
    %v723 = vmul.f32 %v718, %v722
    %v724 = vsub.f32 1.0, %v723
    %v725 = vmul.f32 %v722, %v724
    %v726 = vadd.f32 %v722, %v725
    %vm727 = vweird.f32 %v718
    %vm728 = vweird.f32 %v722
    %vm729 = vmor %vm727, %vm728
    %v730 = vsel %vm729, %v722, %v726
    %v731 = vand.u32 2147483647, %v718
    %vm732 = vcmp.eq.f32.partialorder %v731, 8.507059e+37
    %v733 = vand.u32 %v718, 2147483648
    %v734 = vor.u32 1.1754944e-38, %v733
    %v735 = vsel %vm732, %v734, %v730
    %v736 = vmul.f32 %v713, %v735
    %v737 = vrcp.pop %v721
    %v738 = vmul.f32 %v721, %v737
    %v739 = vsub.f32 1.0, %v738
    %v740 = vmul.f32 %v737, %v739
    %v741 = vadd.f32 %v737, %v740
    %vm742 = vweird.f32 %v721
    %vm743 = vweird.f32 %v737
    %vm744 = vmor %vm742, %vm743
    %v745 = vsel %vm744, %v737, %v741
    %v746 = vand.u32 2147483647, %v721
    %vm747 = vcmp.eq.f32.partialorder %v746, 8.507059e+37
    %v748 = vand.u32 %v721, 2147483648
    %v749 = vor.u32 1.1754944e-38, %v748
    %v750 = vsel %vm747, %v749, %v745
    %v751 = vmul.f32 %v715, %v750
    %v752 = vpack.c.bf16 %v736, %v736
    %v753 = vpack.c.bf16 %v751, %v751
    %v754 = vpack.c.bf16 %v670, %v670
    %v755 = vpack.c.bf16 %v672, %v672
    %v757 = vsel %vm373, %v752, 0
    %v760 = vsel %vm429, %v754, 0
    %762 = vmatpush.bf16.msra.mxu0 0
    %763 = vmatpush.bf16.msra.mxu0 0
    %764 = vmatpush.bf16.msra.mxu0 0
    %765 = vmatpush.bf16.msra.mxu0 0
    %766 = vmatpush.bf16.msra.mxu0 0
    %767 = vmatpush.bf16.msra.mxu0 0
    %768 = vmatpush.bf16.msra.mxu0 0
    %769 = vmatpush.bf16.msra.mxu0 %v760
    %770 = vmatmul.bf16.gmra.mxu0 %v757
    %v771 = vpop.f32.mrf.mxu0
    %v772 = vadd.f32 0.0, %v771
    %v773 = vpop.f32.mrf.mxu0
    %774 = vdwg.mxu0
    %v776 = vsel %vm373, %v753, 0
    %v779 = vsel %vm429, %v755, 0
    %781 = vmatpush.bf16.msra.mxu0 0
    %782 = vmatpush.bf16.msra.mxu0 0
    %783 = vmatpush.bf16.msra.mxu0 0
    %784 = vmatpush.bf16.msra.mxu0 0
    %785 = vmatpush.bf16.msra.mxu0 0
    %786 = vmatpush.bf16.msra.mxu0 0
    %787 = vmatpush.bf16.msra.mxu0 0
    %788 = vmatpush.bf16.msra.mxu0 %v779
    %789 = vmatmul.bf16.gmra.mxu0 %v776
    %v790 = vpop.f32.mrf.mxu0
    %v791 = vadd.f32 0.0, %v790
    %v792 = vpop.f32.mrf.mxu0
    %793 = vdwg.mxu0
    %v794 = vld [vmem:[#allocation8] sm:$0xff]
    %v795 = vld [vmem:[#allocation8 + $0x8] sm:$0xff]
    %v796 = vld [vmem:[#allocation8 + $0x10] sm:$0xff]
    %v797 = vld [vmem:[#allocation8 + $0x18] sm:$0xff]
    %v798 = vld [vmem:[#allocation8 + $0x20] sm:$0xff]
    %v799 = vld [vmem:[#allocation8 + $0x28] sm:$0xff]
    %v800 = vld [vmem:[#allocation8 + $0x30] sm:$0xff]
    %v801 = vld [vmem:[#allocation8 + $0x38] sm:$0xff]
    %v802 = vld [vmem:[#allocation8 + $0x40] sm:$0xff]
    %v803 = vld [vmem:[#allocation8 + $0x48] sm:$0xff]
    %v804 = vld [vmem:[#allocation8 + $0x50] sm:$0xff]
    %v805 = vld [vmem:[#allocation8 + $0x58] sm:$0xff]
    %v806 = vld [vmem:[#allocation8 + $0x60] sm:$0xff]
    %v807 = vld [vmem:[#allocation8 + $0x68] sm:$0xff]
    %v808 = vld [vmem:[#allocation8 + $0x70] sm:$0xff]
    %v809 = vld [vmem:[#allocation8 + $0x78] sm:$0xff]
    %v810 = vld [vmem:[#allocation10] sm:$0x1]
    %v811 = vpack.c.bf16 %v791, %v772
    %v812 = vpack.c.bf16 %v795, %v794
    %v813 = vpack.c.bf16 %v797, %v796
    %v814 = vpack.c.bf16 %v799, %v798
    %v815 = vpack.c.bf16 %v801, %v800
    %v816 = vpack.c.bf16 %v803, %v802
    %v817 = vpack.c.bf16 %v805, %v804
    %v818 = vpack.c.bf16 %v807, %v806
    %v819 = vpack.c.bf16 %v809, %v808
    %v821 = vperm.slane %v810, 0
    %823 = vmatpush.bf16.msra.mxu0 %v819
    %824 = vmatpush.bf16.msra.mxu0 %v818
    %825 = vmatpush.bf16.msra.mxu0 %v817
    %826 = vmatpush.bf16.msra.mxu0 %v816
    %827 = vmatpush.bf16.msra.mxu0 %v815
    %828 = vmatpush.bf16.msra.mxu0 %v814
    %829 = vmatpush.bf16.msra.mxu0 %v813
    %830 = vmatpush.bf16.msra.mxu0 %v812
    %831 = vmatmul.bf16.gmra.mxu0 %v811
    %v832 = vpop.f32.mrf.mxu0
    %v833 = vadd.f32 %v821, %v832
    %v834 = vpop.f32.mrf.mxu0
    %v835 = vadd.f32 %v821, %v834
    %836 = vdwg.mxu0
    %v837 = vadd.f32 %v508, %v833
    %v838 = vadd.f32 %v509, %v835
    %s839 = scalar_lea.vmem [#allocation5], 4
    %v840 = vld [vmem:[%s839] sm:$0x3]
    %v841 = vadd.f32 %v837, %v838
    %v842 = vrot.slane %v841, 4
    %v843 = vadd.f32 %v841, %v842
    %v844 = vrot.slane %v843, 2
    %v845 = vadd.f32 %v843, %v844
    %v846 = vrot.slane %v845, 1
    %v847 = vadd.f32 %v845, %v846
    %v848 = vmul.f32 %v847, %v187
    %v849 = vsub.f32 %v837, %v848
    %v850 = vsub.f32 %v838, %v848
    %v851 = vmul.f32 %v849, %v849
    %v852 = vmul.f32 %v850, %v850
    %v853 = vadd.f32 %v851, %v852
    %v854 = vrot.slane %v853, 4
    %v855 = vadd.f32 %v853, %v854
    %v856 = vrot.slane %v855, 2
    %v857 = vadd.f32 %v855, %v856
    %v858 = vrot.slane %v857, 1
    %v859 = vadd.f32 %v857, %v858
    %v860 = vmul.f32 %v859, %v187
    %v861 = vadd.f32 %v860, 1e-05
    %v862 = vrsqrt.pop %v861
    %v863 = vmul.f32 %v862, %v861
    %v864 = vmul.f32 %v863, %v862
    %v865 = vmul.f32 0.5, %v864
    %v866 = vsub.f32 1.5, %v865
    %v867 = vmul.f32 %v862, %v866
    %vm868 = vweird.f32 %v861
    %vm869 = vweird.f32 %v862
    %vm870 = vmor %vm868, %vm869
    %v871 = vsel %vm870, %v862, %v867
    %v872 = vmul.f32 %v849, %v871
    %v873 = vmul.f32 %v850, %v871
    %v874 = vperm.slane %v840, 0
    %v875 = vmul.f32 %v872, %v874
    %v876 = vmul.f32 %v873, %v874
    %v877 = vperm.slane %v840, 1
    %v878 = vadd.f32 %v875, %v877
    %v879 = vadd.f32 %v876, %v877
    %v880 = vld [vmem:[#allocation11] sm:$0xff]
    %v881 = vld [vmem:[#allocation11 + $0x8] sm:$0xff]
    %v882 = vld [vmem:[#allocation11 + $0x10] sm:$0xff]
    %v883 = vld [vmem:[#allocation11 + $0x18] sm:$0xff]
    %v884 = vld [vmem:[#allocation11 + $0x20] sm:$0xff]
    %v885 = vld [vmem:[#allocation11 + $0x28] sm:$0xff]
    %v886 = vld [vmem:[#allocation11 + $0x30] sm:$0xff]
    %v887 = vld [vmem:[#allocation11 + $0x38] sm:$0xff]
    %v888 = vld [vmem:[#allocation11 + $0x40] sm:$0xff]
    %v889 = vld [vmem:[#allocation11 + $0x48] sm:$0xff]
    %v890 = vld [vmem:[#allocation11 + $0x50] sm:$0xff]
    %v891 = vld [vmem:[#allocation11 + $0x58] sm:$0xff]
    %v892 = vld [vmem:[#allocation11 + $0x60] sm:$0xff]
    %v893 = vld [vmem:[#allocation11 + $0x68] sm:$0xff]
    %v894 = vld [vmem:[#allocation11 + $0x70] sm:$0xff]
    %v895 = vld [vmem:[#allocation11 + $0x78] sm:$0xff]
    %v896 = vld [vmem:[#allocation11 + $0x80] sm:$0xff]
    %v897 = vld [vmem:[#allocation11 + $0x88] sm:$0xff]
    %v898 = vld [vmem:[#allocation11 + $0x90] sm:$0xff]
    %v899 = vld [vmem:[#allocation11 + $0x98] sm:$0xff]
    %v900 = vld [vmem:[#allocation11 + $0xa0] sm:$0xff]
    %v901 = vld [vmem:[#allocation11 + $0xa8] sm:$0xff]
    %v902 = vld [vmem:[#allocation11 + $0xb0] sm:$0xff]
    %v903 = vld [vmem:[#allocation11 + $0xb8] sm:$0xff]
    %v904 = vld [vmem:[#allocation11 + $0xc0] sm:$0xff]
    %v905 = vld [vmem:[#allocation11 + $0xc8] sm:$0xff]
    %v906 = vld [vmem:[#allocation11 + $0xd0] sm:$0xff]
    %v907 = vld [vmem:[#allocation11 + $0xd8] sm:$0xff]
    %v908 = vld [vmem:[#allocation11 + $0xe0] sm:$0xff]
    %v909 = vld [vmem:[#allocation11 + $0xe8] sm:$0xff]
    %v910 = vld [vmem:[#allocation11 + $0xf0] sm:$0xff]
    %v911 = vld [vmem:[#allocation11 + $0xf8] sm:$0xff]
    %v912 = vld [vmem:[#allocation13] sm:$0x3]
    %v913 = vpack.c.bf16 %v879, %v878
    %v914 = vpack.c.bf16 %v882, %v880
    %v915 = vpack.c.bf16 %v883, %v881
    %v916 = vpack.c.bf16 %v886, %v884
    %v917 = vpack.c.bf16 %v887, %v885
    %v918 = vpack.c.bf16 %v890, %v888
    %v919 = vpack.c.bf16 %v891, %v889
    %v920 = vpack.c.bf16 %v894, %v892
    %v921 = vpack.c.bf16 %v895, %v893
    %v922 = vpack.c.bf16 %v898, %v896
    %v923 = vpack.c.bf16 %v899, %v897
    %v924 = vpack.c.bf16 %v902, %v900
    %v925 = vpack.c.bf16 %v903, %v901
    %v926 = vpack.c.bf16 %v906, %v904
    %v927 = vpack.c.bf16 %v907, %v905
    %v928 = vpack.c.bf16 %v910, %v908
    %v929 = vpack.c.bf16 %v911, %v909
    %v931 = vperm.slane %v912, 0
    %v932 = vperm.slane %v912, 1
    %935 = vmatpush.bf16.msra.mxu0 %v928
    %936 = vmatpush.bf16.msra.mxu0 %v926
    %937 = vmatpush.bf16.msra.mxu0 %v924
    %938 = vmatpush.bf16.msra.mxu0 %v922
    %939 = vmatpush.bf16.msra.mxu0 %v920
    %940 = vmatpush.bf16.msra.mxu0 %v918
    %941 = vmatpush.bf16.msra.mxu0 %v916
    %942 = vmatpush.bf16.msra.mxu0 %v914
    %943 = vmatmul.bf16.gmra.mxu0 %v913
    %v944 = vpop.f32.mrf.mxu0
    %v945 = vadd.f32 %v931, %v944
    %v946 = vpop.f32.mrf.mxu0
    %v947 = vadd.f32 %v931, %v946
    %948 = vdwg.mxu0
    %949 = vmatpush.bf16.msra.mxu0 %v929
    %950 = vmatpush.bf16.msra.mxu0 %v927
    %951 = vmatpush.bf16.msra.mxu0 %v925
    %952 = vmatpush.bf16.msra.mxu0 %v923
    %953 = vmatpush.bf16.msra.mxu0 %v921
    %954 = vmatpush.bf16.msra.mxu0 %v919
    %955 = vmatpush.bf16.msra.mxu0 %v917
    %956 = vmatpush.bf16.msra.mxu0 %v915
    %957 = vmatmul.bf16.gmra.mxu0 %v913
    %v958 = vpop.f32.mrf.mxu0
    %v959 = vadd.f32 %v932, %v958
    %v960 = vpop.f32.mrf.mxu0
    %v961 = vadd.f32 %v932, %v960
    %962 = vdwg.mxu0
    %v963 = vmax.f32 %v945, 0.0
    %v964 = vmax.f32 %v959, 0.0
    %v965 = vmax.f32 %v947, 0.0
    %v966 = vmax.f32 %v961, 0.0
    %v967 = vld [vmem:[#allocation14] sm:$0xff]
    %v968 = vld [vmem:[#allocation14 + $0x8] sm:$0xff]
    %v969 = vld [vmem:[#allocation14 + $0x10] sm:$0xff]
    %v970 = vld [vmem:[#allocation14 + $0x18] sm:$0xff]
    %v971 = vld [vmem:[#allocation14 + $0x20] sm:$0xff]
    %v972 = vld [vmem:[#allocation14 + $0x28] sm:$0xff]
    %v973 = vld [vmem:[#allocation14 + $0x30] sm:$0xff]
    %v974 = vld [vmem:[#allocation14 + $0x38] sm:$0xff]
    %v975 = vld [vmem:[#allocation14 + $0x40] sm:$0xff]
    %v976 = vld [vmem:[#allocation14 + $0x48] sm:$0xff]
    %v977 = vld [vmem:[#allocation14 + $0x50] sm:$0xff]
    %v978 = vld [vmem:[#allocation14 + $0x58] sm:$0xff]
    %v979 = vld [vmem:[#allocation14 + $0x60] sm:$0xff]
    %v980 = vld [vmem:[#allocation14 + $0x68] sm:$0xff]
    %v981 = vld [vmem:[#allocation14 + $0x70] sm:$0xff]
    %v982 = vld [vmem:[#allocation14 + $0x78] sm:$0xff]
    %v983 = vld [vmem:[#allocation14 + $0x80] sm:$0xff]
    %v984 = vld [vmem:[#allocation14 + $0x88] sm:$0xff]
    %v985 = vld [vmem:[#allocation14 + $0x90] sm:$0xff]
    %v986 = vld [vmem:[#allocation14 + $0x98] sm:$0xff]
    %v987 = vld [vmem:[#allocation14 + $0xa0] sm:$0xff]
    %v988 = vld [vmem:[#allocation14 + $0xa8] sm:$0xff]
    %v989 = vld [vmem:[#allocation14 + $0xb0] sm:$0xff]
    %v990 = vld [vmem:[#allocation14 + $0xb8] sm:$0xff]
    %v991 = vld [vmem:[#allocation14 + $0xc0] sm:$0xff]
    %v992 = vld [vmem:[#allocation14 + $0xc8] sm:$0xff]
    %v993 = vld [vmem:[#allocation14 + $0xd0] sm:$0xff]
    %v994 = vld [vmem:[#allocation14 + $0xd8] sm:$0xff]
    %v995 = vld [vmem:[#allocation14 + $0xe0] sm:$0xff]
    %v996 = vld [vmem:[#allocation14 + $0xe8] sm:$0xff]
    %v997 = vld [vmem:[#allocation14 + $0xf0] sm:$0xff]
    %v998 = vld [vmem:[#allocation14 + $0xf8] sm:$0xff]
    %v999 = vld [vmem:[#allocation16] sm:$0x1]
    %v1000 = vpack.c.bf16 %v965, %v963
    %v1001 = vpack.c.bf16 %v966, %v964
    %v1002 = vpack.c.bf16 %v968, %v967
    %v1003 = vpack.c.bf16 %v970, %v969
    %v1004 = vpack.c.bf16 %v972, %v971
    %v1005 = vpack.c.bf16 %v974, %v973
    %v1006 = vpack.c.bf16 %v976, %v975
    %v1007 = vpack.c.bf16 %v978, %v977
    %v1008 = vpack.c.bf16 %v980, %v979
    %v1009 = vpack.c.bf16 %v982, %v981
    %v1010 = vpack.c.bf16 %v984, %v983
    %v1011 = vpack.c.bf16 %v986, %v985
    %v1012 = vpack.c.bf16 %v988, %v987
    %v1013 = vpack.c.bf16 %v990, %v989
    %v1014 = vpack.c.bf16 %v992, %v991
    %v1015 = vpack.c.bf16 %v994, %v993
    %v1016 = vpack.c.bf16 %v996, %v995
    %v1017 = vpack.c.bf16 %v998, %v997
    %v1019 = vperm.slane %v999, 0
    %1021 = vmatpush.bf16.msra.mxu0 %v1009
    %1022 = vmatpush.bf16.msra.mxu0 %v1008
    %1023 = vmatpush.bf16.msra.mxu0 %v1007
    %1024 = vmatpush.bf16.msra.mxu0 %v1006
    %1025 = vmatpush.bf16.msra.mxu0 %v1005
    %1026 = vmatpush.bf16.msra.mxu0 %v1004
    %1027 = vmatpush.bf16.msra.mxu0 %v1003
    %1028 = vmatpush.bf16.msra.mxu0 %v1002
    %1029 = vmatmul.bf16.gmra.mxu0 %v1000
    %v1030 = vpop.f32.mrf.mxu0
    %v1031 = vadd.f32 %v1019, %v1030
    %v1032 = vpop.f32.mrf.mxu0
    %v1033 = vadd.f32 %v1019, %v1032
    %1034 = vdwg.mxu0
    %1035 = vmatpush.bf16.msra.mxu0 %v1017
    %1036 = vmatpush.bf16.msra.mxu0 %v1016
    %1037 = vmatpush.bf16.msra.mxu0 %v1015
    %1038 = vmatpush.bf16.msra.mxu0 %v1014
    %1039 = vmatpush.bf16.msra.mxu0 %v1013
    %1040 = vmatpush.bf16.msra.mxu0 %v1012
    %1041 = vmatpush.bf16.msra.mxu0 %v1011
    %1042 = vmatpush.bf16.msra.mxu0 %v1010
    %1043 = vmatmul.bf16.gmra.mxu0 %v1001
    %v1044 = vpop.f32.mrf.mxu0
    %v1045 = vadd.f32 %v1031, %v1044
    %v1046 = vpop.f32.mrf.mxu0
    %v1047 = vadd.f32 %v1033, %v1046
    %1048 = vdwg.mxu0
    %v1049 = vadd.f32 %v837, %v1045
    %v1050 = vadd.f32 %v838, %v1047
    %1051 = vst [vmem:[#allocation17] sm:$0xff] %v1049
    %1052 = vst [vmem:[#allocation17 + $0x8] sm:$0xff] %v1050
    // Predicated region
    $region78: #{encoder_layer.1} parent=1 // pred_check
      _
    $region79: #{encoder_layer.1} parent=1 // pred_check_branch
      %1054 = sbr.rel (0) target = $region81
    $region80: #{encoder_layer.1} parent=1 // pred_region
      %1056 = vsyncadd [#allocation4], 0
      %s1057 = sshll.u32 [#allocation17], 4
      %s1058 = int_to_ptr.vmem [resolvable:$true] %s1057
      %s1059 = sshll.u32 %s10, 4
      %s1060 = int_to_ptr.hbm [resolvable:$true] %s1059
      %1065 = dma.vmem_to_hbm [thread:$0]  %s1058, 256, %s1060, [#allocation4], 128, 128, 8
    $region81: #{encoder_layer.1} parent=1 // pred_fallthru
      _
    // Predicated region
    $region82: #{encoder_layer.1} parent=1 // pred_check
      _
    $region83: #{encoder_layer.1} parent=1 // pred_check_branch
      %1067 = sbr.rel (0) target = $region85
    $region84: #{encoder_layer.1} parent=1 // pred_region
      %1069 = dma.done [#allocation4], 256
    $region85: #{encoder_layer.1} parent=1 // pred_fallthru
      _
    %1070 = vsyncpa [#allocation3], 1
    %1071 = vsyncpa [#allocation6], 1
    %1072 = vsyncpa [#allocation9], 1
    %1073 = vsyncpa [#allocation12], 1
    %1074 = vsyncpa [#allocation15], 1
    %1075 = vsyncpa [#allocation4], 1

</llo_original>
